<compile_context>
chip_gen: v7x
topology: tpu7x:2x2x1
jax: 0.10.0
libtpu: 0.0.40
codegen_flags: <defaults>
</compile_context>

<pallas_src>
import functools

import jax
import jax.numpy as jnp
from jax.experimental import pallas as pl
from jax.experimental.pallas import tpu as pltpu


# --------------------------------------------------------------------------
# Kernel
# --------------------------------------------------------------------------
def divdual_kernel(duals_ref, div_ref, xmask_ref,
                   w1_ref, b1_ref, a1_ref,
                   w2_ref, b2_ref, a2_ref,
                   w3_ref, b3_ref,
                   out_ref,
                   pad1_ref, pad2_ref, col1_ref, col2_ref,
                   *, H, W, pad_side):
    HW = H * W

    # Zero only the halo strips of the y-padded staging buffers.  Done every
    # grid step (cheap, lane-aligned) because scratch is per-core and a
    # `program_id == 0` guard is not safe under megacore "parallel" splits.
    def zero_halo(pad_ref):
        c, l = pad_ref.shape
        pad_ref[:, 0:pad_side] = jnp.zeros((c, pad_side), pad_ref.dtype)
        pad_ref[:, pad_side + HW:] = jnp.zeros((c, l - pad_side - HW),
                                               pad_ref.dtype)

    zero_halo(pad1_ref)
    zero_halo(pad2_ref)

    def im2col(pad_ref, col_ref):
        """pad_ref interior holds the (Cin, H*W) activation (bf16); writes the
        tap-major (9*Cin, H*W) im2col operand into col_ref (bf16)."""
        cin = pad_ref.shape[0]
        for k in range(9):
            dy, dx = k // 3, k % 3
            start = pad_side + (dy - 1) * W + (dx - 1)
            win = pad_ref[:, start:start + HW]            # (Cin, HW) bf16
            if dx != 1:                                   # zero cross-row pixels
                win = win * xmask_ref[dx:dx + 1, :]
            col_ref[k * cin:(k + 1) * cin, :] = win

    def conv(col_ref, w_ref, b_ref):
        # Single (Cout, 9*Cin) @ (9*Cin, HW) bf16 MXU matmul, f32 accumulation;
        # bias added once after the matmul.
        return jnp.dot(w_ref[...], col_ref[...],
                       preferred_element_type=jnp.float32) + b_ref[...]

    def prelu(h, alpha_ref):
        return jnp.where(h >= 0, h, alpha_ref[...] * h)

    # ---- layer 1: cat([div_duals, div]) -> conv(4->32) -> PReLU ------------
    duals = duals_ref[0]                                  # (n_dual, HW) f32
    n_dual = duals.shape[0]
    pad1_ref[0:n_dual, pad_side:pad_side + HW] = duals.astype(jnp.bfloat16)
    pad1_ref[n_dual:, pad_side:pad_side + HW] = div_ref[0].astype(jnp.bfloat16)
    im2col(pad1_ref, col1_ref)
    h = prelu(conv(col1_ref, w1_ref, b1_ref), a1_ref)     # (32, HW) f32

    # ---- layer 2: conv(32->32) -> PReLU -------------------------------------
    pad2_ref[:, pad_side:pad_side + HW] = h.astype(jnp.bfloat16)
    im2col(pad2_ref, col2_ref)
    h = prelu(conv(col2_ref, w2_ref, b2_ref), a2_ref)     # (32, HW) f32

    # ---- layer 3: conv(32->n_dual) + residual --------------------------------
    pad2_ref[:, pad_side:pad_side + HW] = h.astype(jnp.bfloat16)
    im2col(pad2_ref, col2_ref)
    h = conv(col2_ref, w3_ref, b3_ref)                    # (n_dual, HW) f32

    out_ref[0] = (duals + h).astype(out_ref.dtype)


# --------------------------------------------------------------------------
# Wrapper
# --------------------------------------------------------------------------
def _x_boundary_masks(H, W):
    """(3, H*W) bf16 0/1 masks; row dx zeroes flattened positions whose
    x + dx - 1 falls outside [0, W)."""
    xc = jnp.arange(H * W, dtype=jnp.int32) % W
    m = jnp.stack([xc >= 1, xc >= 0, xc <= W - 2])
    return m.astype(jnp.bfloat16)


def divdualnet_forward(div_duals, div, params):
    """div_duals: (N, 2, H, W) f32; div: (N, 2, H, W) f32  (NCHW, like PyTorch)."""
    N, n_dual, H, W = div_duals.shape
    n_div = div.shape[1]
    cin1 = n_dual + n_div
    HW = H * W
    pad_side = pl.cdiv(W + 1, 128) * 128          # lane-aligned halo width
    L = pad_side + HW + pad_side                  # flattened staging length

    duals_f = div_duals.reshape(N, n_dual, HW)    # free reshapes (lane-dense)
    div_f = div.reshape(N, n_div, HW)
    xmask = _x_boundary_masks(H, W)

    w1f, b1, a1 = params["w1f"], params["b1"], params["a1"]
    w2f, b2, a2 = params["w2f"], params["b2"], params["a2"]
    w3f, b3 = params["w3f"], params["b3"]

    kernel = functools.partial(divdual_kernel, H=H, W=W, pad_side=pad_side)
    out = pl.pallas_call(
        kernel,
        out_shape=jax.ShapeDtypeStruct((N, n_dual, HW), jnp.float32),
        grid_spec=pltpu.PrefetchScalarGridSpec(
            num_scalar_prefetch=0,
            grid=(N,),
            in_specs=[
                pl.BlockSpec((1, n_dual, HW), lambda b: (b, 0, 0)),
                pl.BlockSpec((1, n_div, HW), lambda b: (b, 0, 0)),
                pl.BlockSpec((3, HW), lambda b: (0, 0)),
                pl.BlockSpec((32, 9 * cin1), lambda b: (0, 0)),
                pl.BlockSpec((32, 1), lambda b: (0, 0)),
                pl.BlockSpec((32, 1), lambda b: (0, 0)),
                pl.BlockSpec((32, 9 * 32), lambda b: (0, 0)),
                pl.BlockSpec((32, 1), lambda b: (0, 0)),
                pl.BlockSpec((32, 1), lambda b: (0, 0)),
                pl.BlockSpec((n_dual, 9 * 32), lambda b: (0, 0)),
                pl.BlockSpec((n_dual, 1), lambda b: (0, 0)),
            ],
            out_specs=pl.BlockSpec((1, n_dual, HW), lambda b: (b, 0, 0)),
            scratch_shapes=[
                pltpu.VMEM((cin1, L), jnp.bfloat16),       # conv1 staging
                pltpu.VMEM((32, L), jnp.bfloat16),         # conv2/conv3 staging
                pltpu.VMEM((9 * cin1, HW), jnp.bfloat16),  # conv1 im2col
                pltpu.VMEM((9 * 32, HW), jnp.bfloat16),    # conv2/conv3 im2col
            ],
        ),
        compiler_params=pltpu.CompilerParams(
            dimension_semantics=("parallel",)),
    )(duals_f, div_f, xmask, w1f, b1, a1, w2f, b2, a2, w3f, b3)
    return out.reshape(N, n_dual, H, W)


# --------------------------------------------------------------------------
# Deterministic parameter initialisation (mirrors the module's _init_weights)
# --------------------------------------------------------------------------
def init_divdualnet_params(key, n_dual=2, n_div=2):
    """Xavier-uniform conv weights, zero bias, PReLU alpha = 0.0.  Weights are
    rounded through bf16 once so the kernel (bf16 MXU operands) and the f32
    reference use identical parameter values."""
    cin1 = n_dual + n_div

    def make_conv(k, cout, cin):
        bound = (6.0 / (9.0 * (cin + cout))) ** 0.5
        w = jax.random.uniform(k, (cout, cin, 3, 3), jnp.float32, -bound, bound)
        w = w.astype(jnp.bfloat16).astype(jnp.float32)        # shared rounding
        # Fused layout: (Cout, 9*Cin), column index = (dy*3 + dx)*Cin + c.
        wf = jnp.transpose(w, (0, 2, 3, 1)).reshape(cout, 9 * cin)
        return w, wf.astype(jnp.bfloat16)

    k1, k2, k3 = jax.random.split(key, 3)
    w1, w1f = make_conv(k1, 32, cin1)
    w2, w2f = make_conv(k2, 32, 32)
    w3, w3f = make_conv(k3, n_dual, 32)
    return {
        "w1": w1, "w1f": w1f,
        "b1": jnp.zeros((32, 1), jnp.float32),
        "a1": jnp.zeros((32, 1), jnp.float32),
        "w2": w2, "w2f": w2f,
        "b2": jnp.zeros((32, 1), jnp.float32),
        "a2": jnp.zeros((32, 1), jnp.float32),
        "w3": w3, "w3f": w3f,
        "b3": jnp.zeros((n_dual, 1), jnp.float32),
    }


# --------------------------------------------------------------------------
# Pure-JAX reference (correctness check)
# --------------------------------------------------------------------------
def divdualnet_reference(div_duals, div, params):
    x = jnp.concatenate([div_duals, div], axis=1)

    def conv(x, w, b):
        y = jax.lax.conv_general_dilated(
            x, w, window_strides=(1, 1), padding="SAME",
            dimension_numbers=("NCHW", "OIHW", "NCHW"))
        return y + b.reshape(1, -1, 1, 1)

    def prelu(x, a):
        return jnp.where(x >= 0, x, a.reshape(1, -1, 1, 1) * x)

    h = prelu(conv(x, params["w1"], params["b1"]), params["a1"])
    h = prelu(conv(h, params["w2"], params["b2"]), params["a2"])
    h = conv(h, params["w3"], params["b3"])
    return div_duals + h


# --------------------------------------------------------------------------
if __name__ == "__main__":
    N, H, W = 2, 16, 16
    n_dual, n_div = 2, 2          # conv1 in_channels = 4, conv3 out_channels = 2

    key = jax.random.PRNGKey(0)
    k_duals, k_div, k_params = jax.random.split(key, 3)
    div_duals = jax.random.normal(k_duals, (N, n_dual, H, W), jnp.float32)
    div = jax.random.normal(k_div, (N, n_div, H, W), jnp.float32)
    params = init_divdualnet_params(k_params, n_dual=n_dual, n_div=n_div)

    out = jax.block_until_ready(divdualnet_forward(div_duals, div, params))
    ref = jax.block_until_ready(divdualnet_reference(div_duals, div, params))

    assert out.shape == (N, n_dual, H, W), out.shape
    # bf16 matmul operands (f32 accumulation) => tolerance looser than pure f32.
    max_err = float(jnp.max(jnp.abs(out - ref)))
    assert jnp.allclose(out, ref, atol=5e-2, rtol=5e-2), max_err
    print("KERNEL_OK")
</pallas_src>

<mosaic_0001>
module attributes {stable_mosaic.version = 11 : i64} {
  func.func @divdual_kernel(%arg0: i32, %arg1: memref<1x2x256xf32, #tpu.memory_space<vmem>>, %arg2: memref<1x2x256xf32, #tpu.memory_space<vmem>>, %arg3: memref<3x256xbf16, #tpu.memory_space<vmem>>, %arg4: memref<32x36xbf16, #tpu.memory_space<vmem>>, %arg5: memref<32x1xf32, #tpu.memory_space<vmem>>, %arg6: memref<32x1xf32, #tpu.memory_space<vmem>>, %arg7: memref<32x288xbf16, #tpu.memory_space<vmem>>, %arg8: memref<32x1xf32, #tpu.memory_space<vmem>>, %arg9: memref<32x1xf32, #tpu.memory_space<vmem>>, %arg10: memref<2x288xbf16, #tpu.memory_space<vmem>>, %arg11: memref<2x1xf32, #tpu.memory_space<vmem>>, %arg12: memref<1x2x256xf32, #tpu.memory_space<vmem>>, %arg13: memref<4x512xbf16, #tpu.memory_space<vmem>>, %arg14: memref<32x512xbf16, #tpu.memory_space<vmem>>, %arg15: memref<36x256xbf16, #tpu.memory_space<vmem>>, %arg16: memref<288x256xbf16, #tpu.memory_space<vmem>>) attributes {dimension_semantics = [#tpu.dimension_semantics<parallel>], iteration_bounds = array<i64: 2>, scalar_prefetch = 0 : i64, scratch_operands = 4 : i64, tpu.core_type = #tpu.core_type<tc>, window_params = [{transform_indices = @transform_0, window_bounds = array<i64: 1, 2, 256>}, {transform_indices = @transform_1, window_bounds = array<i64: 1, 2, 256>}, {pipeline_mode = #tpu.pipeline_mode<synchronous>, transform_indices = @transform_2, window_bounds = array<i64: 3, 256>}, {pipeline_mode = #tpu.pipeline_mode<synchronous>, transform_indices = @transform_3, window_bounds = array<i64: 32, 36>}, {pipeline_mode = #tpu.pipeline_mode<synchronous>, transform_indices = @transform_4, window_bounds = array<i64: 32, 1>}, {pipeline_mode = #tpu.pipeline_mode<synchronous>, transform_indices = @transform_5, window_bounds = array<i64: 32, 1>}, {pipeline_mode = #tpu.pipeline_mode<synchronous>, transform_indices = @transform_6, window_bounds = array<i64: 32, 288>}, {pipeline_mode = #tpu.pipeline_mode<synchronous>, transform_indices = @transform_7, window_bounds = array<i64: 32, 1>}, {pipeline_mode = #tpu.pipeline_mode<synchronous>, transform_indices = @transform_8, window_bounds = array<i64: 32, 1>}, {pipeline_mode = #tpu.pipeline_mode<synchronous>, transform_indices = @transform_9, window_bounds = array<i64: 2, 288>}, {pipeline_mode = #tpu.pipeline_mode<synchronous>, transform_indices = @transform_10, window_bounds = array<i64: 2, 1>}, {transform_indices = @transform_11, window_bounds = array<i64: 1, 2, 256>}]} {
    %cst = arith.constant 0.000000e+00 : bf16
    %0 = vector.broadcast %cst : bf16 to vector<4x128xbf16>
    %c0 = arith.constant 0 : index
    %c0_0 = arith.constant 0 : index
    %1 = vector.load %arg13[%c0, %c0_0] : memref<4x512xbf16, #tpu.memory_space<vmem>>, vector<4x128xbf16>
    tpu.vector_store %arg13[%c0, %c0_0], %0 {strides = array<i32>} : memref<4x512xbf16, #tpu.memory_space<vmem>>, vector<4x128xbf16>,
    %cst_1 = arith.constant 0.000000e+00 : bf16
    %2 = vector.broadcast %cst_1 : bf16 to vector<4x128xbf16>
    %c0_2 = arith.constant 0 : index
    %c384 = arith.constant 384 : index
    %3 = vector.load %arg13[%c0_2, %c384] : memref<4x512xbf16, #tpu.memory_space<vmem>>, vector<4x128xbf16>
    tpu.vector_store %arg13[%c0_2, %c384], %2 {strides = array<i32>} : memref<4x512xbf16, #tpu.memory_space<vmem>>, vector<4x128xbf16>,
    %cst_3 = arith.constant 0.000000e+00 : bf16
    %4 = vector.broadcast %cst_3 : bf16 to vector<32x128xbf16>
    %c0_4 = arith.constant 0 : index
    %c0_5 = arith.constant 0 : index
    %5 = vector.load %arg14[%c0_4, %c0_5] : memref<32x512xbf16, #tpu.memory_space<vmem>>, vector<32x128xbf16>
    tpu.vector_store %arg14[%c0_4, %c0_5], %4 {strides = array<i32>} : memref<32x512xbf16, #tpu.memory_space<vmem>>, vector<32x128xbf16>,
    %cst_6 = arith.constant 0.000000e+00 : bf16
    %6 = vector.broadcast %cst_6 : bf16 to vector<32x128xbf16>
    %c0_7 = arith.constant 0 : index
    %c384_8 = arith.constant 384 : index
    %7 = vector.load %arg14[%c0_7, %c384_8] : memref<32x512xbf16, #tpu.memory_space<vmem>>, vector<32x128xbf16>
    tpu.vector_store %arg14[%c0_7, %c384_8], %6 {strides = array<i32>} : memref<32x512xbf16, #tpu.memory_space<vmem>>, vector<32x128xbf16>,
    %c0_9 = arith.constant 0 : index
    %c0_10 = arith.constant 0 : index
    %c0_11 = arith.constant 0 : index
    %8 = vector.load %arg1[%c0_9, %c0_10, %c0_11] : memref<1x2x256xf32, #tpu.memory_space<vmem>>, vector<1x2x256xf32>
    %9 = vector.shape_cast %8 : vector<1x2x256xf32> to vector<2x256xf32>
    %10 = arith.truncf %9 : vector<2x256xf32> to vector<2x256xbf16>
    %c0_12 = arith.constant 0 : index
    %c128 = arith.constant 128 : index
    %11 = vector.load %arg13[%c0_12, %c128] : memref<4x512xbf16, #tpu.memory_space<vmem>>, vector<2x256xbf16>
    tpu.vector_store %arg13[%c0_12, %c128], %10 {strides = array<i32>} : memref<4x512xbf16, #tpu.memory_space<vmem>>, vector<2x256xbf16>,
    %c0_13 = arith.constant 0 : index
    %c0_14 = arith.constant 0 : index
    %c0_15 = arith.constant 0 : index
    %12 = vector.load %arg2[%c0_13, %c0_14, %c0_15] : memref<1x2x256xf32, #tpu.memory_space<vmem>>, vector<1x2x256xf32>
    %13 = vector.shape_cast %12 : vector<1x2x256xf32> to vector<2x256xf32>
    %14 = arith.truncf %13 : vector<2x256xf32> to vector<2x256xbf16>
    %c2 = arith.constant 2 : index
    %c128_16 = arith.constant 128 : index
    %15 = vector.load %arg13[%c2, %c128_16] : memref<4x512xbf16, #tpu.memory_space<vmem>>, vector<2x256xbf16>
    tpu.vector_store %arg13[%c2, %c128_16], %14 {strides = array<i32>} : memref<4x512xbf16, #tpu.memory_space<vmem>>, vector<2x256xbf16>,
    %c0_17 = arith.constant 0 : index
    %c111 = arith.constant 111 : index
    %16 = vector.load %arg13[%c0_17, %c111] : memref<4x512xbf16, #tpu.memory_space<vmem>>, vector<4x256xbf16>
    %c0_18 = arith.constant 0 : index
    %c0_19 = arith.constant 0 : index
    %17 = vector.load %arg3[%c0_18, %c0_19] : memref<3x256xbf16, #tpu.memory_space<vmem>>, vector<1x256xbf16>
    %18 = vector.broadcast %17 : vector<1x256xbf16> to vector<4x256xbf16>
    %19 = arith.mulf %16, %18 : vector<4x256xbf16>
    %c0_20 = arith.constant 0 : index
    %c0_21 = arith.constant 0 : index
    %20 = vector.load %arg15[%c0_20, %c0_21] : memref<36x256xbf16, #tpu.memory_space<vmem>>, vector<4x256xbf16>
    tpu.vector_store %arg15[%c0_20, %c0_21], %19 {strides = array<i32>} : memref<36x256xbf16, #tpu.memory_space<vmem>>, vector<4x256xbf16>,
    %c0_22 = arith.constant 0 : index
    %c112 = arith.constant 112 : index
    %21 = vector.load %arg13[%c0_22, %c112] : memref<4x512xbf16, #tpu.memory_space<vmem>>, vector<4x256xbf16>
    %c4 = arith.constant 4 : index
    %c0_23 = arith.constant 0 : index
    %22 = vector.load %arg15[%c4, %c0_23] : memref<36x256xbf16, #tpu.memory_space<vmem>>, vector<4x256xbf16>
    tpu.vector_store %arg15[%c4, %c0_23], %21 {strides = array<i32>} : memref<36x256xbf16, #tpu.memory_space<vmem>>, vector<4x256xbf16>,
    %c0_24 = arith.constant 0 : index
    %c113 = arith.constant 113 : index
    %23 = vector.load %arg13[%c0_24, %c113] : memref<4x512xbf16, #tpu.memory_space<vmem>>, vector<4x256xbf16>
    %c2_25 = arith.constant 2 : index
    %c0_26 = arith.constant 0 : index
    %24 = vector.load %arg3[%c2_25, %c0_26] : memref<3x256xbf16, #tpu.memory_space<vmem>>, vector<1x256xbf16>
    %25 = vector.broadcast %24 : vector<1x256xbf16> to vector<4x256xbf16>
    %26 = arith.mulf %23, %25 : vector<4x256xbf16>
    %c8 = arith.constant 8 : index
    %c0_27 = arith.constant 0 : index
    %27 = vector.load %arg15[%c8, %c0_27] : memref<36x256xbf16, #tpu.memory_space<vmem>>, vector<4x256xbf16>
    tpu.vector_store %arg15[%c8, %c0_27], %26 {strides = array<i32>} : memref<36x256xbf16, #tpu.memory_space<vmem>>, vector<4x256xbf16>,
    %c0_28 = arith.constant 0 : index
    %c127 = arith.constant 127 : index
    %28 = vector.load %arg13[%c0_28, %c127] : memref<4x512xbf16, #tpu.memory_space<vmem>>, vector<4x256xbf16>
    %c0_29 = arith.constant 0 : index
    %c0_30 = arith.constant 0 : index
    %29 = vector.load %arg3[%c0_29, %c0_30] : memref<3x256xbf16, #tpu.memory_space<vmem>>, vector<1x256xbf16>
    %30 = vector.broadcast %29 : vector<1x256xbf16> to vector<4x256xbf16>
    %31 = arith.mulf %28, %30 : vector<4x256xbf16>
    %c12 = arith.constant 12 : index
    %c0_31 = arith.constant 0 : index
    %32 = vector.load %arg15[%c12, %c0_31] : memref<36x256xbf16, #tpu.memory_space<vmem>>, vector<4x256xbf16>
    tpu.vector_store %arg15[%c12, %c0_31], %31 {strides = array<i32>} : memref<36x256xbf16, #tpu.memory_space<vmem>>, vector<4x256xbf16>,
    %c0_32 = arith.constant 0 : index
    %c128_33 = arith.constant 128 : index
    %33 = vector.load %arg13[%c0_32, %c128_33] : memref<4x512xbf16, #tpu.memory_space<vmem>>, vector<4x256xbf16>
    %c16 = arith.constant 16 : index
    %c0_34 = arith.constant 0 : index
    %34 = vector.load %arg15[%c16, %c0_34] : memref<36x256xbf16, #tpu.memory_space<vmem>>, vector<4x256xbf16>
    tpu.vector_store %arg15[%c16, %c0_34], %33 {strides = array<i32>} : memref<36x256xbf16, #tpu.memory_space<vmem>>, vector<4x256xbf16>,
    %c0_35 = arith.constant 0 : index
    %c129 = arith.constant 129 : index
    %35 = vector.load %arg13[%c0_35, %c129] : memref<4x512xbf16, #tpu.memory_space<vmem>>, vector<4x256xbf16>
    %c2_36 = arith.constant 2 : index
    %c0_37 = arith.constant 0 : index
    %36 = vector.load %arg3[%c2_36, %c0_37] : memref<3x256xbf16, #tpu.memory_space<vmem>>, vector<1x256xbf16>
    %37 = vector.broadcast %36 : vector<1x256xbf16> to vector<4x256xbf16>
    %38 = arith.mulf %35, %37 : vector<4x256xbf16>
    %c20 = arith.constant 20 : index
    %c0_38 = arith.constant 0 : index
    %39 = vector.load %arg15[%c20, %c0_38] : memref<36x256xbf16, #tpu.memory_space<vmem>>, vector<4x256xbf16>
    tpu.vector_store %arg15[%c20, %c0_38], %38 {strides = array<i32>} : memref<36x256xbf16, #tpu.memory_space<vmem>>, vector<4x256xbf16>,
    %c0_39 = arith.constant 0 : index
    %c143 = arith.constant 143 : index
    %40 = vector.load %arg13[%c0_39, %c143] : memref<4x512xbf16, #tpu.memory_space<vmem>>, vector<4x256xbf16>
    %c0_40 = arith.constant 0 : index
    %c0_41 = arith.constant 0 : index
    %41 = vector.load %arg3[%c0_40, %c0_41] : memref<3x256xbf16, #tpu.memory_space<vmem>>, vector<1x256xbf16>
    %42 = vector.broadcast %41 : vector<1x256xbf16> to vector<4x256xbf16>
    %43 = arith.mulf %40, %42 : vector<4x256xbf16>
    %c24 = arith.constant 24 : index
    %c0_42 = arith.constant 0 : index
    %44 = vector.load %arg15[%c24, %c0_42] : memref<36x256xbf16, #tpu.memory_space<vmem>>, vector<4x256xbf16>
    tpu.vector_store %arg15[%c24, %c0_42], %43 {strides = array<i32>} : memref<36x256xbf16, #tpu.memory_space<vmem>>, vector<4x256xbf16>,
    %c0_43 = arith.constant 0 : index
    %c144 = arith.constant 144 : index
    %45 = vector.load %arg13[%c0_43, %c144] : memref<4x512xbf16, #tpu.memory_space<vmem>>, vector<4x256xbf16>
    %c28 = arith.constant 28 : index
    %c0_44 = arith.constant 0 : index
    %46 = vector.load %arg15[%c28, %c0_44] : memref<36x256xbf16, #tpu.memory_space<vmem>>, vector<4x256xbf16>
    tpu.vector_store %arg15[%c28, %c0_44], %45 {strides = array<i32>} : memref<36x256xbf16, #tpu.memory_space<vmem>>, vector<4x256xbf16>,
    %c0_45 = arith.constant 0 : index
    %c145 = arith.constant 145 : index
    %47 = vector.load %arg13[%c0_45, %c145] : memref<4x512xbf16, #tpu.memory_space<vmem>>, vector<4x256xbf16>
    %c2_46 = arith.constant 2 : index
    %c0_47 = arith.constant 0 : index
    %48 = vector.load %arg3[%c2_46, %c0_47] : memref<3x256xbf16, #tpu.memory_space<vmem>>, vector<1x256xbf16>
    %49 = vector.broadcast %48 : vector<1x256xbf16> to vector<4x256xbf16>
    %50 = arith.mulf %47, %49 : vector<4x256xbf16>
    %c32 = arith.constant 32 : index
    %c0_48 = arith.constant 0 : index
    %51 = vector.load %arg15[%c32, %c0_48] : memref<36x256xbf16, #tpu.memory_space<vmem>>, vector<4x256xbf16>
    tpu.vector_store %arg15[%c32, %c0_48], %50 {strides = array<i32>} : memref<36x256xbf16, #tpu.memory_space<vmem>>, vector<4x256xbf16>,
    %c0_49 = arith.constant 0 : index
    %c0_50 = arith.constant 0 : index
    %52 = vector.load %arg4[%c0_49, %c0_50] : memref<32x36xbf16, #tpu.memory_space<vmem>>, vector<32x36xbf16>
    %c0_51 = arith.constant 0 : index
    %c0_52 = arith.constant 0 : index
    %53 = vector.load %arg15[%c0_51, %c0_52] : memref<36x256xbf16, #tpu.memory_space<vmem>>, vector<36x256xbf16>
    %cst_53 = arith.constant dense<0.000000e+00> : vector<32x256xf32>
    %54 = tpu.matmul %52, %53, %cst_53 {dimension_numbers = #tpu.dot_dimension_numbers<[1], [0], [0], [1], [0, 0, 1, 1], [], []>} : vector<32x36xbf16>, vector<36x256xbf16>, vector<32x256xf32> -> vector<32x256xf32>
    %c0_54 = arith.constant 0 : index
    %c0_55 = arith.constant 0 : index
    %55 = vector.load %arg5[%c0_54, %c0_55] : memref<32x1xf32, #tpu.memory_space<vmem>>, vector<32x1xf32>
    %56 = vector.broadcast %55 : vector<32x1xf32> to vector<32x256xf32>
    %57 = arith.addf %54, %56 : vector<32x256xf32>
    %cst_56 = arith.constant 0.000000e+00 : f32
    %58 = vector.broadcast %cst_56 : f32 to vector<32x256xf32>
    %59 = arith.cmpf oge, %57, %58 : vector<32x256xf32>
    %c0_57 = arith.constant 0 : index
    %c0_58 = arith.constant 0 : index
    %60 = vector.load %arg6[%c0_57, %c0_58] : memref<32x1xf32, #tpu.memory_space<vmem>>, vector<32x1xf32>
    %61 = vector.broadcast %60 : vector<32x1xf32> to vector<32x256xf32>
    %62 = arith.mulf %61, %57 : vector<32x256xf32>
    %63 = arith.select %59, %57, %62 : vector<32x256xi1>, vector<32x256xf32>
    %64 = arith.truncf %63 : vector<32x256xf32> to vector<32x256xbf16>
    %c0_59 = arith.constant 0 : index
    %c128_60 = arith.constant 128 : index
    %65 = vector.load %arg14[%c0_59, %c128_60] : memref<32x512xbf16, #tpu.memory_space<vmem>>, vector<32x256xbf16>
    tpu.vector_store %arg14[%c0_59, %c128_60], %64 {strides = array<i32>} : memref<32x512xbf16, #tpu.memory_space<vmem>>, vector<32x256xbf16>,
    %c0_61 = arith.constant 0 : index
    %c111_62 = arith.constant 111 : index
    %66 = vector.load %arg14[%c0_61, %c111_62] : memref<32x512xbf16, #tpu.memory_space<vmem>>, vector<32x256xbf16>
    %c0_63 = arith.constant 0 : index
    %c0_64 = arith.constant 0 : index
    %67 = vector.load %arg3[%c0_63, %c0_64] : memref<3x256xbf16, #tpu.memory_space<vmem>>, vector<1x256xbf16>
    %68 = vector.broadcast %67 : vector<1x256xbf16> to vector<32x256xbf16>
    %69 = arith.mulf %66, %68 : vector<32x256xbf16>
    %c0_65 = arith.constant 0 : index
    %c0_66 = arith.constant 0 : index
    %70 = vector.load %arg16[%c0_65, %c0_66] : memref<288x256xbf16, #tpu.memory_space<vmem>>, vector<32x256xbf16>
    tpu.vector_store %arg16[%c0_65, %c0_66], %69 {strides = array<i32>} : memref<288x256xbf16, #tpu.memory_space<vmem>>, vector<32x256xbf16>,
    %c0_67 = arith.constant 0 : index
    %c112_68 = arith.constant 112 : index
    %71 = vector.load %arg14[%c0_67, %c112_68] : memref<32x512xbf16, #tpu.memory_space<vmem>>, vector<32x256xbf16>
    %c32_69 = arith.constant 32 : index
    %c0_70 = arith.constant 0 : index
    %72 = vector.load %arg16[%c32_69, %c0_70] : memref<288x256xbf16, #tpu.memory_space<vmem>>, vector<32x256xbf16>
    tpu.vector_store %arg16[%c32_69, %c0_70], %71 {strides = array<i32>} : memref<288x256xbf16, #tpu.memory_space<vmem>>, vector<32x256xbf16>,
    %c0_71 = arith.constant 0 : index
    %c113_72 = arith.constant 113 : index
    %73 = vector.load %arg14[%c0_71, %c113_72] : memref<32x512xbf16, #tpu.memory_space<vmem>>, vector<32x256xbf16>
    %c2_73 = arith.constant 2 : index
    %c0_74 = arith.constant 0 : index
    %74 = vector.load %arg3[%c2_73, %c0_74] : memref<3x256xbf16, #tpu.memory_space<vmem>>, vector<1x256xbf16>
    %75 = vector.broadcast %74 : vector<1x256xbf16> to vector<32x256xbf16>
    %76 = arith.mulf %73, %75 : vector<32x256xbf16>
    %c64 = arith.constant 64 : index
    %c0_75 = arith.constant 0 : index
    %77 = vector.load %arg16[%c64, %c0_75] : memref<288x256xbf16, #tpu.memory_space<vmem>>, vector<32x256xbf16>
    tpu.vector_store %arg16[%c64, %c0_75], %76 {strides = array<i32>} : memref<288x256xbf16, #tpu.memory_space<vmem>>, vector<32x256xbf16>,
    %c0_76 = arith.constant 0 : index
    %c127_77 = arith.constant 127 : index
    %78 = vector.load %arg14[%c0_76, %c127_77] : memref<32x512xbf16, #tpu.memory_space<vmem>>, vector<32x256xbf16>
    %c0_78 = arith.constant 0 : index
    %c0_79 = arith.constant 0 : index
    %79 = vector.load %arg3[%c0_78, %c0_79] : memref<3x256xbf16, #tpu.memory_space<vmem>>, vector<1x256xbf16>
    %80 = vector.broadcast %79 : vector<1x256xbf16> to vector<32x256xbf16>
    %81 = arith.mulf %78, %80 : vector<32x256xbf16>
    %c96 = arith.constant 96 : index
    %c0_80 = arith.constant 0 : index
    %82 = vector.load %arg16[%c96, %c0_80] : memref<288x256xbf16, #tpu.memory_space<vmem>>, vector<32x256xbf16>
    tpu.vector_store %arg16[%c96, %c0_80], %81 {strides = array<i32>} : memref<288x256xbf16, #tpu.memory_space<vmem>>, vector<32x256xbf16>,
    %c0_81 = arith.constant 0 : index
    %c128_82 = arith.constant 128 : index
    %83 = vector.load %arg14[%c0_81, %c128_82] : memref<32x512xbf16, #tpu.memory_space<vmem>>, vector<32x256xbf16>
    %c128_83 = arith.constant 128 : index
    %c0_84 = arith.constant 0 : index
    %84 = vector.load %arg16[%c128_83, %c0_84] : memref<288x256xbf16, #tpu.memory_space<vmem>>, vector<32x256xbf16>
    tpu.vector_store %arg16[%c128_83, %c0_84], %83 {strides = array<i32>} : memref<288x256xbf16, #tpu.memory_space<vmem>>, vector<32x256xbf16>,
    %c0_85 = arith.constant 0 : index
    %c129_86 = arith.constant 129 : index
    %85 = vector.load %arg14[%c0_85, %c129_86] : memref<32x512xbf16, #tpu.memory_space<vmem>>, vector<32x256xbf16>
    %c2_87 = arith.constant 2 : index
    %c0_88 = arith.constant 0 : index
    %86 = vector.load %arg3[%c2_87, %c0_88] : memref<3x256xbf16, #tpu.memory_space<vmem>>, vector<1x256xbf16>
    %87 = vector.broadcast %86 : vector<1x256xbf16> to vector<32x256xbf16>
    %88 = arith.mulf %85, %87 : vector<32x256xbf16>
    %c160 = arith.constant 160 : index
    %c0_89 = arith.constant 0 : index
    %89 = vector.load %arg16[%c160, %c0_89] : memref<288x256xbf16, #tpu.memory_space<vmem>>, vector<32x256xbf16>
    tpu.vector_store %arg16[%c160, %c0_89], %88 {strides = array<i32>} : memref<288x256xbf16, #tpu.memory_space<vmem>>, vector<32x256xbf16>,
    %c0_90 = arith.constant 0 : index
    %c143_91 = arith.constant 143 : index
    %90 = vector.load %arg14[%c0_90, %c143_91] : memref<32x512xbf16, #tpu.memory_space<vmem>>, vector<32x256xbf16>
    %c0_92 = arith.constant 0 : index
    %c0_93 = arith.constant 0 : index
    %91 = vector.load %arg3[%c0_92, %c0_93] : memref<3x256xbf16, #tpu.memory_space<vmem>>, vector<1x256xbf16>
    %92 = vector.broadcast %91 : vector<1x256xbf16> to vector<32x256xbf16>
    %93 = arith.mulf %90, %92 : vector<32x256xbf16>
    %c192 = arith.constant 192 : index
    %c0_94 = arith.constant 0 : index
    %94 = vector.load %arg16[%c192, %c0_94] : memref<288x256xbf16, #tpu.memory_space<vmem>>, vector<32x256xbf16>
    tpu.vector_store %arg16[%c192, %c0_94], %93 {strides = array<i32>} : memref<288x256xbf16, #tpu.memory_space<vmem>>, vector<32x256xbf16>,
    %c0_95 = arith.constant 0 : index
    %c144_96 = arith.constant 144 : index
    %95 = vector.load %arg14[%c0_95, %c144_96] : memref<32x512xbf16, #tpu.memory_space<vmem>>, vector<32x256xbf16>
    %c224 = arith.constant 224 : index
    %c0_97 = arith.constant 0 : index
    %96 = vector.load %arg16[%c224, %c0_97] : memref<288x256xbf16, #tpu.memory_space<vmem>>, vector<32x256xbf16>
    tpu.vector_store %arg16[%c224, %c0_97], %95 {strides = array<i32>} : memref<288x256xbf16, #tpu.memory_space<vmem>>, vector<32x256xbf16>,
    %c0_98 = arith.constant 0 : index
    %c145_99 = arith.constant 145 : index
    %97 = vector.load %arg14[%c0_98, %c145_99] : memref<32x512xbf16, #tpu.memory_space<vmem>>, vector<32x256xbf16>
    %c2_100 = arith.constant 2 : index
    %c0_101 = arith.constant 0 : index
    %98 = vector.load %arg3[%c2_100, %c0_101] : memref<3x256xbf16, #tpu.memory_space<vmem>>, vector<1x256xbf16>
    %99 = vector.broadcast %98 : vector<1x256xbf16> to vector<32x256xbf16>
    %100 = arith.mulf %97, %99 : vector<32x256xbf16>
    %c256 = arith.constant 256 : index
    %c0_102 = arith.constant 0 : index
    %101 = vector.load %arg16[%c256, %c0_102] : memref<288x256xbf16, #tpu.memory_space<vmem>>, vector<32x256xbf16>
    tpu.vector_store %arg16[%c256, %c0_102], %100 {strides = array<i32>} : memref<288x256xbf16, #tpu.memory_space<vmem>>, vector<32x256xbf16>,
    %c0_103 = arith.constant 0 : index
    %c0_104 = arith.constant 0 : index
    %102 = vector.load %arg7[%c0_103, %c0_104] : memref<32x288xbf16, #tpu.memory_space<vmem>>, vector<32x288xbf16>
    %c0_105 = arith.constant 0 : index
    %c0_106 = arith.constant 0 : index
    %103 = vector.load %arg16[%c0_105, %c0_106] : memref<288x256xbf16, #tpu.memory_space<vmem>>, vector<288x256xbf16>
    %cst_107 = arith.constant dense<0.000000e+00> : vector<32x256xf32>
    %104 = tpu.matmul %102, %103, %cst_107 {dimension_numbers = #tpu.dot_dimension_numbers<[1], [0], [0], [1], [0, 0, 1, 1], [], []>} : vector<32x288xbf16>, vector<288x256xbf16>, vector<32x256xf32> -> vector<32x256xf32>
    %c0_108 = arith.constant 0 : index
    %c0_109 = arith.constant 0 : index
    %105 = vector.load %arg8[%c0_108, %c0_109] : memref<32x1xf32, #tpu.memory_space<vmem>>, vector<32x1xf32>
    %106 = vector.broadcast %105 : vector<32x1xf32> to vector<32x256xf32>
    %107 = arith.addf %104, %106 : vector<32x256xf32>
    %cst_110 = arith.constant 0.000000e+00 : f32
    %108 = vector.broadcast %cst_110 : f32 to vector<32x256xf32>
    %109 = arith.cmpf oge, %107, %108 : vector<32x256xf32>
    %c0_111 = arith.constant 0 : index
    %c0_112 = arith.constant 0 : index
    %110 = vector.load %arg9[%c0_111, %c0_112] : memref<32x1xf32, #tpu.memory_space<vmem>>, vector<32x1xf32>
    %111 = vector.broadcast %110 : vector<32x1xf32> to vector<32x256xf32>
    %112 = arith.mulf %111, %107 : vector<32x256xf32>
    %113 = arith.select %109, %107, %112 : vector<32x256xi1>, vector<32x256xf32>
    %114 = arith.truncf %113 : vector<32x256xf32> to vector<32x256xbf16>
    %c0_113 = arith.constant 0 : index
    %c128_114 = arith.constant 128 : index
    %115 = vector.load %arg14[%c0_113, %c128_114] : memref<32x512xbf16, #tpu.memory_space<vmem>>, vector<32x256xbf16>
    tpu.vector_store %arg14[%c0_113, %c128_114], %114 {strides = array<i32>} : memref<32x512xbf16, #tpu.memory_space<vmem>>, vector<32x256xbf16>,
    %c0_115 = arith.constant 0 : index
    %c111_116 = arith.constant 111 : index
    %116 = vector.load %arg14[%c0_115, %c111_116] : memref<32x512xbf16, #tpu.memory_space<vmem>>, vector<32x256xbf16>
    %c0_117 = arith.constant 0 : index
    %c0_118 = arith.constant 0 : index
    %117 = vector.load %arg3[%c0_117, %c0_118] : memref<3x256xbf16, #tpu.memory_space<vmem>>, vector<1x256xbf16>
    %118 = vector.broadcast %117 : vector<1x256xbf16> to vector<32x256xbf16>
    %119 = arith.mulf %116, %118 : vector<32x256xbf16>
    %c0_119 = arith.constant 0 : index
    %c0_120 = arith.constant 0 : index
    %120 = vector.load %arg16[%c0_119, %c0_120] : memref<288x256xbf16, #tpu.memory_space<vmem>>, vector<32x256xbf16>
    tpu.vector_store %arg16[%c0_119, %c0_120], %119 {strides = array<i32>} : memref<288x256xbf16, #tpu.memory_space<vmem>>, vector<32x256xbf16>,
    %c0_121 = arith.constant 0 : index
    %c112_122 = arith.constant 112 : index
    %121 = vector.load %arg14[%c0_121, %c112_122] : memref<32x512xbf16, #tpu.memory_space<vmem>>, vector<32x256xbf16>
    %c32_123 = arith.constant 32 : index
    %c0_124 = arith.constant 0 : index
    %122 = vector.load %arg16[%c32_123, %c0_124] : memref<288x256xbf16, #tpu.memory_space<vmem>>, vector<32x256xbf16>
    tpu.vector_store %arg16[%c32_123, %c0_124], %121 {strides = array<i32>} : memref<288x256xbf16, #tpu.memory_space<vmem>>, vector<32x256xbf16>,
    %c0_125 = arith.constant 0 : index
    %c113_126 = arith.constant 113 : index
    %123 = vector.load %arg14[%c0_125, %c113_126] : memref<32x512xbf16, #tpu.memory_space<vmem>>, vector<32x256xbf16>
    %c2_127 = arith.constant 2 : index
    %c0_128 = arith.constant 0 : index
    %124 = vector.load %arg3[%c2_127, %c0_128] : memref<3x256xbf16, #tpu.memory_space<vmem>>, vector<1x256xbf16>
    %125 = vector.broadcast %124 : vector<1x256xbf16> to vector<32x256xbf16>
    %126 = arith.mulf %123, %125 : vector<32x256xbf16>
    %c64_129 = arith.constant 64 : index
    %c0_130 = arith.constant 0 : index
    %127 = vector.load %arg16[%c64_129, %c0_130] : memref<288x256xbf16, #tpu.memory_space<vmem>>, vector<32x256xbf16>
    tpu.vector_store %arg16[%c64_129, %c0_130], %126 {strides = array<i32>} : memref<288x256xbf16, #tpu.memory_space<vmem>>, vector<32x256xbf16>,
    %c0_131 = arith.constant 0 : index
    %c127_132 = arith.constant 127 : index
    %128 = vector.load %arg14[%c0_131, %c127_132] : memref<32x512xbf16, #tpu.memory_space<vmem>>, vector<32x256xbf16>
    %c0_133 = arith.constant 0 : index
    %c0_134 = arith.constant 0 : index
    %129 = vector.load %arg3[%c0_133, %c0_134] : memref<3x256xbf16, #tpu.memory_space<vmem>>, vector<1x256xbf16>
    %130 = vector.broadcast %129 : vector<1x256xbf16> to vector<32x256xbf16>
    %131 = arith.mulf %128, %130 : vector<32x256xbf16>
    %c96_135 = arith.constant 96 : index
    %c0_136 = arith.constant 0 : index
    %132 = vector.load %arg16[%c96_135, %c0_136] : memref<288x256xbf16, #tpu.memory_space<vmem>>, vector<32x256xbf16>
    tpu.vector_store %arg16[%c96_135, %c0_136], %131 {strides = array<i32>} : memref<288x256xbf16, #tpu.memory_space<vmem>>, vector<32x256xbf16>,
    %c0_137 = arith.constant 0 : index
    %c128_138 = arith.constant 128 : index
    %133 = vector.load %arg14[%c0_137, %c128_138] : memref<32x512xbf16, #tpu.memory_space<vmem>>, vector<32x256xbf16>
    %c128_139 = arith.constant 128 : index
    %c0_140 = arith.constant 0 : index
    %134 = vector.load %arg16[%c128_139, %c0_140] : memref<288x256xbf16, #tpu.memory_space<vmem>>, vector<32x256xbf16>
    tpu.vector_store %arg16[%c128_139, %c0_140], %133 {strides = array<i32>} : memref<288x256xbf16, #tpu.memory_space<vmem>>, vector<32x256xbf16>,
    %c0_141 = arith.constant 0 : index
    %c129_142 = arith.constant 129 : index
    %135 = vector.load %arg14[%c0_141, %c129_142] : memref<32x512xbf16, #tpu.memory_space<vmem>>, vector<32x256xbf16>
    %c2_143 = arith.constant 2 : index
    %c0_144 = arith.constant 0 : index
    %136 = vector.load %arg3[%c2_143, %c0_144] : memref<3x256xbf16, #tpu.memory_space<vmem>>, vector<1x256xbf16>
    %137 = vector.broadcast %136 : vector<1x256xbf16> to vector<32x256xbf16>
    %138 = arith.mulf %135, %137 : vector<32x256xbf16>
    %c160_145 = arith.constant 160 : index
    %c0_146 = arith.constant 0 : index
    %139 = vector.load %arg16[%c160_145, %c0_146] : memref<288x256xbf16, #tpu.memory_space<vmem>>, vector<32x256xbf16>
    tpu.vector_store %arg16[%c160_145, %c0_146], %138 {strides = array<i32>} : memref<288x256xbf16, #tpu.memory_space<vmem>>, vector<32x256xbf16>,
    %c0_147 = arith.constant 0 : index
    %c143_148 = arith.constant 143 : index
    %140 = vector.load %arg14[%c0_147, %c143_148] : memref<32x512xbf16, #tpu.memory_space<vmem>>, vector<32x256xbf16>
    %c0_149 = arith.constant 0 : index
    %c0_150 = arith.constant 0 : index
    %141 = vector.load %arg3[%c0_149, %c0_150] : memref<3x256xbf16, #tpu.memory_space<vmem>>, vector<1x256xbf16>
    %142 = vector.broadcast %141 : vector<1x256xbf16> to vector<32x256xbf16>
    %143 = arith.mulf %140, %142 : vector<32x256xbf16>
    %c192_151 = arith.constant 192 : index
    %c0_152 = arith.constant 0 : index
    %144 = vector.load %arg16[%c192_151, %c0_152] : memref<288x256xbf16, #tpu.memory_space<vmem>>, vector<32x256xbf16>
    tpu.vector_store %arg16[%c192_151, %c0_152], %143 {strides = array<i32>} : memref<288x256xbf16, #tpu.memory_space<vmem>>, vector<32x256xbf16>,
    %c0_153 = arith.constant 0 : index
    %c144_154 = arith.constant 144 : index
    %145 = vector.load %arg14[%c0_153, %c144_154] : memref<32x512xbf16, #tpu.memory_space<vmem>>, vector<32x256xbf16>
    %c224_155 = arith.constant 224 : index
    %c0_156 = arith.constant 0 : index
    %146 = vector.load %arg16[%c224_155, %c0_156] : memref<288x256xbf16, #tpu.memory_space<vmem>>, vector<32x256xbf16>
    tpu.vector_store %arg16[%c224_155, %c0_156], %145 {strides = array<i32>} : memref<288x256xbf16, #tpu.memory_space<vmem>>, vector<32x256xbf16>,
    %c0_157 = arith.constant 0 : index
    %c145_158 = arith.constant 145 : index
    %147 = vector.load %arg14[%c0_157, %c145_158] : memref<32x512xbf16, #tpu.memory_space<vmem>>, vector<32x256xbf16>
    %c2_159 = arith.constant 2 : index
    %c0_160 = arith.constant 0 : index
    %148 = vector.load %arg3[%c2_159, %c0_160] : memref<3x256xbf16, #tpu.memory_space<vmem>>, vector<1x256xbf16>
    %149 = vector.broadcast %148 : vector<1x256xbf16> to vector<32x256xbf16>
    %150 = arith.mulf %147, %149 : vector<32x256xbf16>
    %c256_161 = arith.constant 256 : index
    %c0_162 = arith.constant 0 : index
    %151 = vector.load %arg16[%c256_161, %c0_162] : memref<288x256xbf16, #tpu.memory_space<vmem>>, vector<32x256xbf16>
    tpu.vector_store %arg16[%c256_161, %c0_162], %150 {strides = array<i32>} : memref<288x256xbf16, #tpu.memory_space<vmem>>, vector<32x256xbf16>,
    %c0_163 = arith.constant 0 : index
    %c0_164 = arith.constant 0 : index
    %152 = vector.load %arg10[%c0_163, %c0_164] : memref<2x288xbf16, #tpu.memory_space<vmem>>, vector<2x288xbf16>
    %c0_165 = arith.constant 0 : index
    %c0_166 = arith.constant 0 : index
    %153 = vector.load %arg16[%c0_165, %c0_166] : memref<288x256xbf16, #tpu.memory_space<vmem>>, vector<288x256xbf16>
    %cst_167 = arith.constant dense<0.000000e+00> : vector<2x256xf32>
    %154 = tpu.matmul %152, %153, %cst_167 {dimension_numbers = #tpu.dot_dimension_numbers<[1], [0], [0], [1], [0, 0, 1, 1], [], []>} : vector<2x288xbf16>, vector<288x256xbf16>, vector<2x256xf32> -> vector<2x256xf32>
    %c0_168 = arith.constant 0 : index
    %c0_169 = arith.constant 0 : index
    %155 = vector.load %arg11[%c0_168, %c0_169] : memref<2x1xf32, #tpu.memory_space<vmem>>, vector<2x1xf32>
    %156 = vector.broadcast %155 : vector<2x1xf32> to vector<2x256xf32>
    %157 = arith.addf %154, %156 : vector<2x256xf32>
    %158 = arith.addf %9, %157 : vector<2x256xf32>
    %c0_170 = arith.constant 0 : index
    %c0_171 = arith.constant 0 : index
    %c0_172 = arith.constant 0 : index
    %159 = vector.load %arg12[%c0_170, %c0_171, %c0_172] : memref<1x2x256xf32, #tpu.memory_space<vmem>>, vector<1x2x256xf32>
    %160 = vector.shape_cast %159 : vector<1x2x256xf32> to vector<2x256xf32>
    %161 = vector.shape_cast %158 : vector<2x256xf32> to vector<1x2x256xf32>
    tpu.vector_store %arg12[%c0_170, %c0_171, %c0_172], %161 {strides = array<i32>} : memref<1x2x256xf32, #tpu.memory_space<vmem>>, vector<1x2x256xf32>,
    return
  }
  func.func @transform_0(%arg0: i32) -> (i32, i32, i32) {
    %c0_i32 = arith.constant 0 : i32
    %c0_i32_0 = arith.constant 0 : i32
    %c0_i32_1 = arith.constant 0 : i32
    return %arg0, %c0_i32, %c0_i32_0 : i32, i32, i32
  }
  func.func @transform_1(%arg0: i32) -> (i32, i32, i32) {
    %c0_i32 = arith.constant 0 : i32
    %c0_i32_0 = arith.constant 0 : i32
    %c0_i32_1 = arith.constant 0 : i32
    return %arg0, %c0_i32, %c0_i32_0 : i32, i32, i32
  }
  func.func @transform_2(%arg0: i32) -> (i32, i32) {
    %c0_i32 = arith.constant 0 : i32
    %c0_i32_0 = arith.constant 0 : i32
    %c0_i32_1 = arith.constant 0 : i32
    return %c0_i32, %c0_i32_0 : i32, i32
  }
  func.func @transform_3(%arg0: i32) -> (i32, i32) {
    %c0_i32 = arith.constant 0 : i32
    %c0_i32_0 = arith.constant 0 : i32
    %c0_i32_1 = arith.constant 0 : i32
    return %c0_i32, %c0_i32_0 : i32, i32
  }
  func.func @transform_4(%arg0: i32) -> (i32, i32) {
    %c0_i32 = arith.constant 0 : i32
    %c0_i32_0 = arith.constant 0 : i32
    %c0_i32_1 = arith.constant 0 : i32
    return %c0_i32, %c0_i32_0 : i32, i32
  }
  func.func @transform_5(%arg0: i32) -> (i32, i32) {
    %c0_i32 = arith.constant 0 : i32
    %c0_i32_0 = arith.constant 0 : i32
    %c0_i32_1 = arith.constant 0 : i32
    return %c0_i32, %c0_i32_0 : i32, i32
  }
  func.func @transform_6(%arg0: i32) -> (i32, i32) {
    %c0_i32 = arith.constant 0 : i32
    %c0_i32_0 = arith.constant 0 : i32
    %c0_i32_1 = arith.constant 0 : i32
    return %c0_i32, %c0_i32_0 : i32, i32
  }
  func.func @transform_7(%arg0: i32) -> (i32, i32) {
    %c0_i32 = arith.constant 0 : i32
    %c0_i32_0 = arith.constant 0 : i32
    %c0_i32_1 = arith.constant 0 : i32
    return %c0_i32, %c0_i32_0 : i32, i32
  }
  func.func @transform_8(%arg0: i32) -> (i32, i32) {
    %c0_i32 = arith.constant 0 : i32
    %c0_i32_0 = arith.constant 0 : i32
    %c0_i32_1 = arith.constant 0 : i32
    return %c0_i32, %c0_i32_0 : i32, i32
  }
  func.func @transform_9(%arg0: i32) -> (i32, i32) {
    %c0_i32 = arith.constant 0 : i32
    %c0_i32_0 = arith.constant 0 : i32
    %c0_i32_1 = arith.constant 0 : i32
    return %c0_i32, %c0_i32_0 : i32, i32
  }
  func.func @transform_10(%arg0: i32) -> (i32, i32) {
    %c0_i32 = arith.constant 0 : i32
    %c0_i32_0 = arith.constant 0 : i32
    %c0_i32_1 = arith.constant 0 : i32
    return %c0_i32, %c0_i32_0 : i32, i32
  }
  func.func @transform_11(%arg0: i32) -> (i32, i32, i32) {
    %c0_i32 = arith.constant 0 : i32
    %c0_i32_0 = arith.constant 0 : i32
    %c0_i32_1 = arith.constant 0 : i32
    return %arg0, %c0_i32, %c0_i32_0 : i32, i32, i32
  }
}

</mosaic_0001>

<llo_original>
// kernel: tpu_custom_call.1
$region0: #{tpu_custom_call.1}
  #allocation0 [shape = 'u32[]', space=smem, size = 0x4, offset = 0x4, fixed_abs, tag = 'smem constant byte address 0x4 - core index']
  #allocation1 [shape = 'u32[144,128]{1,0:T(1,128)}', space=vmem, size = 0x12000, scoped, tag = 'internal scratch']
  #allocation2 [shape = 'bf16[4,512]{1,0:T(4,128)(2,1)}', space=vmem, size = 0x1000, scoped, tag = 'scratch operand']
  #allocation3 [shape = 'bf16[32,512]{1,0:T(16,128)(2,1)}', space=vmem, size = 0x8000, scoped, tag = 'scratch operand']
  #allocation4 [shape = 'bf16[36,256]{1,0:T(8,128)(2,1)}', space=vmem, size = 0x5000, scoped, tag = 'scratch operand']
  #allocation5 [shape = 'bf16[288,256]{1,0:T(16,128)(2,1)}', space=vmem, size = 0x24000, scoped, tag = 'scratch operand']
  %s0 = inlined_call_operand.vmem [shape: f32[2,2,256], index: 0, kind: input, shape index: {}]
  %s1 = inlined_call_operand.vmem [shape: f32[2,2,256], index: 1, kind: input, shape index: {}]
  %s2 = inlined_call_operand.vmem [shape: bf16[3,256], index: 2, kind: input, shape index: {}]
  %s3 = inlined_call_operand.vmem [shape: bf16[32,36], index: 3, kind: input, shape index: {}]
  %s4 = inlined_call_operand.vmem [shape: f32[32,1], index: 4, kind: input, shape index: {}]
  %s5 = inlined_call_operand.vmem [shape: f32[32,1], index: 5, kind: input, shape index: {}]
  %s6 = inlined_call_operand.vmem [shape: bf16[32,288], index: 6, kind: input, shape index: {}]
  %s7 = inlined_call_operand.vmem [shape: f32[32,1], index: 7, kind: input, shape index: {}]
  %s8 = inlined_call_operand.vmem [shape: f32[32,1], index: 8, kind: input, shape index: {}]
  %s9 = inlined_call_operand.vmem [shape: bf16[2,288], index: 9, kind: input, shape index: {}]
  %s10 = inlined_call_operand.vmem [shape: f32[2,1], index: 10, kind: input, shape index: {}]
  %s11 = inlined_call_operand.hbm [shape: f32[2,2,256], index: 11, kind: output, shape index: {}]
  %s12 = sld [smem:[#allocation0]]
  $region77: #{tpu_custom_call.1} parent=0
    _
  %s14 = ssub.s32 1, %s12
  %s15 = scalar_select 0, %s14, %s12
  $region1: #{tpu_custom_call.1} parent=0
    #allocation6 [shape = 'u8[4096]{0}', space=vmem, size = 0x1000, scoped, tag = 'output window, operand 0']
    #allocation7 [shape = 's32[2]{0}', space=sflag, size = 0x8, scoped, tag = 'scoped memory for tpu_custom_call.1']
    %16 = vsyncpa [#allocation7], 0
    %s17 = scalar_lea.sflag [#allocation7], 1
    %18 = vsyncpa %s17, 0
    loop: start=0, step=1, limit=4
    $region2: #{tpu_custom_call.1} parent=1 // loop_pre_header
      _
    $region3: #{tpu_custom_call.1} parent=1 // loop_header
      %s20 = sphi 0, %s24
      %p21 = scmp.ge.s32.totalorder %s20, 4
      %s30 = sphi 0, %s32
      %s33 = sphi 0, %s30
      %s34 = sphi 0, %s33
      %s50 = sphi 0, %s34
      %s56 = sphi 0, %s58
      %s59 = sphi 0, %s56
      %s60 = sphi 0, %s59
      %s76 = sphi 0, %s60
      %s80 = sphi 0, %s80
      %s82 = sphi 0, %s80
      %s83 = sphi 0, %s82
      %s97 = sphi 0, %s83
      %s101 = sphi 0, %s101
      %s103 = sphi 0, %s101
      %s104 = sphi 0, %s103
      %s118 = sphi 0, %s104
      %s122 = sphi 0, %s122
      %s124 = sphi 0, %s122
      %s125 = sphi 0, %s124
      %s139 = sphi 0, %s125
      %s143 = sphi 0, %s143
      %s145 = sphi 0, %s143
      %s146 = sphi 0, %s145
      %s160 = sphi 0, %s146
      %s164 = sphi 0, %s164
      %s166 = sphi 0, %s164
      %s167 = sphi 0, %s166
      %s181 = sphi 0, %s167
      %s185 = sphi 0, %s185
      %s187 = sphi 0, %s185
      %s188 = sphi 0, %s187
      %s202 = sphi 0, %s188
      %s206 = sphi 0, %s206
      %s208 = sphi 0, %s206
      %s209 = sphi 0, %s208
      %s223 = sphi 0, %s209
      %s227 = sphi 0, %s227
      %s229 = sphi 0, %s227
      %s230 = sphi 0, %s229
      %s244 = sphi 0, %s230
      %s248 = sphi 0, %s248
      %s250 = sphi 0, %s248
      %s251 = sphi 0, %s250
      %s265 = sphi 0, %s251
      %s271 = sphi 0, %s273
      %s274 = sphi 0, %s271
      %s275 = sphi 0, %s274
      %s291 = sphi 0, %s275
    $region4: #{tpu_custom_call.1} parent=1 // loop_header_branch
      %23 = sbr.rel (%p21) target = $region8
    $region5: #{tpu_custom_call.1} parent=1 // loop_body
      %s25 = ssub.s32 %s20, 1
      %s26 = ssub.s32 %s20, 2
      %s27 = sadd.s32 %s20, 1
      %s28 = ssub.s32 %s20, %s27
      %p29 = scmp.eq.s32.totalorder %s28, 0
      %s31 = sadd.s32 %s30, 1
      %s32 = scalar_select %p29, %s30, %s31
      %p35 = pneg %p29
      %p36 = scmp.eq.s32.totalorder %s20, 1
      %p37 = por %p35, %p36
      %p38 = scmp.ne.s32.totalorder %s30, %s33
      %p39 = scmp.eq.s32.totalorder %s20, 0
      %p40 = por %p38, %p39
      %p41 = scmp.ne.s32.totalorder %s30, %s33
      %p42 = scmp.eq.s32.totalorder %s25, 1
      %p43 = por %p41, %p42
      %p44 = scmp.ne.s32.totalorder %s33, %s34
      %p45 = scmp.eq.s32.totalorder %s25, 0
      %p46 = por %p44, %p45
      %p47 = scmp.ne.s32.totalorder %s33, %s34
      %p48 = scmp.eq.s32.totalorder %s26, 1
      %p49 = por %p47, %p48
      %p51 = scmp.ne.s32.totalorder %s34, %s50
      %p52 = scmp.eq.s32.totalorder %s26, 0
      %p53 = por %p51, %p52
      %s54 = ssub.s32 %s20, %s27
      %p55 = scmp.eq.s32.totalorder %s54, 0
      %s57 = sadd.s32 %s56, 1
      %s58 = scalar_select %p55, %s56, %s57
      %p61 = pneg %p55
      %p62 = scmp.eq.s32.totalorder %s20, 1
      %p63 = por %p61, %p62
      %p64 = scmp.ne.s32.totalorder %s56, %s59
      %p65 = scmp.eq.s32.totalorder %s20, 0
      %p66 = por %p64, %p65
      %p67 = scmp.ne.s32.totalorder %s56, %s59
      %p68 = scmp.eq.s32.totalorder %s25, 1
      %p69 = por %p67, %p68
      %p70 = scmp.ne.s32.totalorder %s59, %s60
      %p71 = scmp.eq.s32.totalorder %s25, 0
      %p72 = por %p70, %p71
      %p73 = scmp.ne.s32.totalorder %s59, %s60
      %p74 = scmp.eq.s32.totalorder %s26, 1
      %p75 = por %p73, %p74
      %p77 = scmp.ne.s32.totalorder %s60, %s76
      %p78 = scmp.eq.s32.totalorder %s26, 0
      %p79 = por %p77, %p78
      %s81 = sadd.s32 %s80, 1
      %p84 = scmp.eq.s32.totalorder %s20, 1
      %p85 = scmp.ne.s32.totalorder %s80, %s82
      %p86 = scmp.eq.s32.totalorder %s20, 0
      %p87 = por %p85, %p86
      %p88 = scmp.ne.s32.totalorder %s80, %s82
      %p89 = scmp.eq.s32.totalorder %s25, 1
      %p90 = por %p88, %p89
      %p91 = scmp.ne.s32.totalorder %s82, %s83
      %p92 = scmp.eq.s32.totalorder %s25, 0
      %p93 = por %p91, %p92
      %p94 = scmp.ne.s32.totalorder %s82, %s83
      %p95 = scmp.eq.s32.totalorder %s26, 1
      %p96 = por %p94, %p95
      %p98 = scmp.ne.s32.totalorder %s83, %s97
      %p99 = scmp.eq.s32.totalorder %s26, 0
      %p100 = por %p98, %p99
      %s102 = sadd.s32 %s101, 1
      %p105 = scmp.eq.s32.totalorder %s20, 1
      %p106 = scmp.ne.s32.totalorder %s101, %s103
      %p107 = scmp.eq.s32.totalorder %s20, 0
      %p108 = por %p106, %p107
      %p109 = scmp.ne.s32.totalorder %s101, %s103
      %p110 = scmp.eq.s32.totalorder %s25, 1
      %p111 = por %p109, %p110
      %p112 = scmp.ne.s32.totalorder %s103, %s104
      %p113 = scmp.eq.s32.totalorder %s25, 0
      %p114 = por %p112, %p113
      %p115 = scmp.ne.s32.totalorder %s103, %s104
      %p116 = scmp.eq.s32.totalorder %s26, 1
      %p117 = por %p115, %p116
      %p119 = scmp.ne.s32.totalorder %s104, %s118
      %p120 = scmp.eq.s32.totalorder %s26, 0
      %p121 = por %p119, %p120
      %s123 = sadd.s32 %s122, 1
      %p126 = scmp.eq.s32.totalorder %s20, 1
      %p127 = scmp.ne.s32.totalorder %s122, %s124
      %p128 = scmp.eq.s32.totalorder %s20, 0
      %p129 = por %p127, %p128
      %p130 = scmp.ne.s32.totalorder %s122, %s124
      %p131 = scmp.eq.s32.totalorder %s25, 1
      %p132 = por %p130, %p131
      %p133 = scmp.ne.s32.totalorder %s124, %s125
      %p134 = scmp.eq.s32.totalorder %s25, 0
      %p135 = por %p133, %p134
      %p136 = scmp.ne.s32.totalorder %s124, %s125
      %p137 = scmp.eq.s32.totalorder %s26, 1
      %p138 = por %p136, %p137
      %p140 = scmp.ne.s32.totalorder %s125, %s139
      %p141 = scmp.eq.s32.totalorder %s26, 0
      %p142 = por %p140, %p141
      %s144 = sadd.s32 %s143, 1
      %p147 = scmp.eq.s32.totalorder %s20, 1
      %p148 = scmp.ne.s32.totalorder %s143, %s145
      %p149 = scmp.eq.s32.totalorder %s20, 0
      %p150 = por %p148, %p149
      %p151 = scmp.ne.s32.totalorder %s143, %s145
      %p152 = scmp.eq.s32.totalorder %s25, 1
      %p153 = por %p151, %p152
      %p154 = scmp.ne.s32.totalorder %s145, %s146
      %p155 = scmp.eq.s32.totalorder %s25, 0
      %p156 = por %p154, %p155
      %p157 = scmp.ne.s32.totalorder %s145, %s146
      %p158 = scmp.eq.s32.totalorder %s26, 1
      %p159 = por %p157, %p158
      %p161 = scmp.ne.s32.totalorder %s146, %s160
      %p162 = scmp.eq.s32.totalorder %s26, 0
      %p163 = por %p161, %p162
      %s165 = sadd.s32 %s164, 1
      %p168 = scmp.eq.s32.totalorder %s20, 1
      %p169 = scmp.ne.s32.totalorder %s164, %s166
      %p170 = scmp.eq.s32.totalorder %s20, 0
      %p171 = por %p169, %p170
      %p172 = scmp.ne.s32.totalorder %s164, %s166
      %p173 = scmp.eq.s32.totalorder %s25, 1
      %p174 = por %p172, %p173
      %p175 = scmp.ne.s32.totalorder %s166, %s167
      %p176 = scmp.eq.s32.totalorder %s25, 0
      %p177 = por %p175, %p176
      %p178 = scmp.ne.s32.totalorder %s166, %s167
      %p179 = scmp.eq.s32.totalorder %s26, 1
      %p180 = por %p178, %p179
      %p182 = scmp.ne.s32.totalorder %s167, %s181
      %p183 = scmp.eq.s32.totalorder %s26, 0
      %p184 = por %p182, %p183
      %s186 = sadd.s32 %s185, 1
      %p189 = scmp.eq.s32.totalorder %s20, 1
      %p190 = scmp.ne.s32.totalorder %s185, %s187
      %p191 = scmp.eq.s32.totalorder %s20, 0
      %p192 = por %p190, %p191
      %p193 = scmp.ne.s32.totalorder %s185, %s187
      %p194 = scmp.eq.s32.totalorder %s25, 1
      %p195 = por %p193, %p194
      %p196 = scmp.ne.s32.totalorder %s187, %s188
      %p197 = scmp.eq.s32.totalorder %s25, 0
      %p198 = por %p196, %p197
      %p199 = scmp.ne.s32.totalorder %s187, %s188
      %p200 = scmp.eq.s32.totalorder %s26, 1
      %p201 = por %p199, %p200
      %p203 = scmp.ne.s32.totalorder %s188, %s202
      %p204 = scmp.eq.s32.totalorder %s26, 0
      %p205 = por %p203, %p204
      %s207 = sadd.s32 %s206, 1
      %p210 = scmp.eq.s32.totalorder %s20, 1
      %p211 = scmp.ne.s32.totalorder %s206, %s208
      %p212 = scmp.eq.s32.totalorder %s20, 0
      %p213 = por %p211, %p212
      %p214 = scmp.ne.s32.totalorder %s206, %s208
      %p215 = scmp.eq.s32.totalorder %s25, 1
      %p216 = por %p214, %p215
      %p217 = scmp.ne.s32.totalorder %s208, %s209
      %p218 = scmp.eq.s32.totalorder %s25, 0
      %p219 = por %p217, %p218
      %p220 = scmp.ne.s32.totalorder %s208, %s209
      %p221 = scmp.eq.s32.totalorder %s26, 1
      %p222 = por %p220, %p221
      %p224 = scmp.ne.s32.totalorder %s209, %s223
      %p225 = scmp.eq.s32.totalorder %s26, 0
      %p226 = por %p224, %p225
      %s228 = sadd.s32 %s227, 1
      %p231 = scmp.eq.s32.totalorder %s20, 1
      %p232 = scmp.ne.s32.totalorder %s227, %s229
      %p233 = scmp.eq.s32.totalorder %s20, 0
      %p234 = por %p232, %p233
      %p235 = scmp.ne.s32.totalorder %s227, %s229
      %p236 = scmp.eq.s32.totalorder %s25, 1
      %p237 = por %p235, %p236
      %p238 = scmp.ne.s32.totalorder %s229, %s230
      %p239 = scmp.eq.s32.totalorder %s25, 0
      %p240 = por %p238, %p239
      %p241 = scmp.ne.s32.totalorder %s229, %s230
      %p242 = scmp.eq.s32.totalorder %s26, 1
      %p243 = por %p241, %p242
      %p245 = scmp.ne.s32.totalorder %s230, %s244
      %p246 = scmp.eq.s32.totalorder %s26, 0
      %p247 = por %p245, %p246
      %s249 = sadd.s32 %s248, 1
      %p252 = scmp.eq.s32.totalorder %s20, 1
      %p253 = scmp.ne.s32.totalorder %s248, %s250
      %p254 = scmp.eq.s32.totalorder %s20, 0
      %p255 = por %p253, %p254
      %p256 = scmp.ne.s32.totalorder %s248, %s250
      %p257 = scmp.eq.s32.totalorder %s25, 1
      %p258 = por %p256, %p257
      %p259 = scmp.ne.s32.totalorder %s250, %s251
      %p260 = scmp.eq.s32.totalorder %s25, 0
      %p261 = por %p259, %p260
      %p262 = scmp.ne.s32.totalorder %s250, %s251
      %p263 = scmp.eq.s32.totalorder %s26, 1
      %p264 = por %p262, %p263
      %p266 = scmp.ne.s32.totalorder %s251, %s265
      %p267 = scmp.eq.s32.totalorder %s26, 0
      %p268 = por %p266, %p267
      %s269 = ssub.s32 %s20, %s27
      %p270 = scmp.eq.s32.totalorder %s269, 0
      %s272 = sadd.s32 %s271, 1
      %s273 = scalar_select %p270, %s271, %s272
      %p276 = pneg %p270
      %p277 = scmp.eq.s32.totalorder %s20, 1
      %p278 = por %p276, %p277
      %p279 = scmp.ne.s32.totalorder %s271, %s274
      %p280 = scmp.eq.s32.totalorder %s20, 0
      %p281 = por %p279, %p280
      %p282 = scmp.ne.s32.totalorder %s271, %s274
      %p283 = scmp.eq.s32.totalorder %s25, 1
      %p284 = por %p282, %p283
      %p285 = scmp.ne.s32.totalorder %s274, %s275
      %p286 = scmp.eq.s32.totalorder %s25, 0
      %p287 = por %p285, %p286
      %p288 = scmp.ne.s32.totalorder %s274, %s275
      %p289 = scmp.eq.s32.totalorder %s26, 1
      %p290 = por %p288, %p289
      %p292 = scmp.ne.s32.totalorder %s275, %s291
      %p293 = scmp.eq.s32.totalorder %s26, 0
      %p294 = por %p292, %p293
      %p295 = scmp.le.s32.totalorder 1, %s20
      %p296 = scmp.lt.s32.totalorder %s20, 3
      %p297 = pnand %p295, %p296
      %p298 = pneg %p297
      // Predicated region
      $region9: #{tpu_custom_call.1} parent=5 // pred_check
        _
      $region10: #{tpu_custom_call.1} parent=5 // pred_check_branch
        %300 = sbr.rel (%p297) target = $region12
      $region11: #{tpu_custom_call.1} parent=5 // pred_region
        %s301 = ssub.s32 %s20, 1
        // Predicated region
        $region13: #{tpu_custom_call.1} parent=11 // pred_check
          %p302 = pneg %p93
        $region14: #{tpu_custom_call.1} parent=11 // pred_check_branch
          %304 = sbr.rel (%p302) target = $region16
        $region15: #{tpu_custom_call.1} parent=11 // pred_region
          _
        $region16: #{tpu_custom_call.1} parent=11 // pred_fallthru
          _
        // Predicated region
        $region17: #{tpu_custom_call.1} parent=11 // pred_check
          %p305 = pneg %p114
        $region18: #{tpu_custom_call.1} parent=11 // pred_check_branch
          %307 = sbr.rel (%p305) target = $region20
        $region19: #{tpu_custom_call.1} parent=11 // pred_region
          _
        $region20: #{tpu_custom_call.1} parent=11 // pred_fallthru
          _
        // Predicated region
        $region21: #{tpu_custom_call.1} parent=11 // pred_check
          %p308 = pneg %p135
        $region22: #{tpu_custom_call.1} parent=11 // pred_check_branch
          %310 = sbr.rel (%p308) target = $region24
        $region23: #{tpu_custom_call.1} parent=11 // pred_region
          _
        $region24: #{tpu_custom_call.1} parent=11 // pred_fallthru
          _
        // Predicated region
        $region25: #{tpu_custom_call.1} parent=11 // pred_check
          %p311 = pneg %p156
        $region26: #{tpu_custom_call.1} parent=11 // pred_check_branch
          %313 = sbr.rel (%p311) target = $region28
        $region27: #{tpu_custom_call.1} parent=11 // pred_region
          _
        $region28: #{tpu_custom_call.1} parent=11 // pred_fallthru
          _
        // Predicated region
        $region29: #{tpu_custom_call.1} parent=11 // pred_check
          %p314 = pneg %p177
        $region30: #{tpu_custom_call.1} parent=11 // pred_check_branch
          %316 = sbr.rel (%p314) target = $region32
        $region31: #{tpu_custom_call.1} parent=11 // pred_region
          _
        $region32: #{tpu_custom_call.1} parent=11 // pred_fallthru
          _
        // Predicated region
        $region33: #{tpu_custom_call.1} parent=11 // pred_check
          %p317 = pneg %p198
        $region34: #{tpu_custom_call.1} parent=11 // pred_check_branch
          %319 = sbr.rel (%p317) target = $region36
        $region35: #{tpu_custom_call.1} parent=11 // pred_region
          _
        $region36: #{tpu_custom_call.1} parent=11 // pred_fallthru
          _
        // Predicated region
        $region37: #{tpu_custom_call.1} parent=11 // pred_check
          %p320 = pneg %p219
        $region38: #{tpu_custom_call.1} parent=11 // pred_check_branch
          %322 = sbr.rel (%p320) target = $region40
        $region39: #{tpu_custom_call.1} parent=11 // pred_region
          _
        $region40: #{tpu_custom_call.1} parent=11 // pred_fallthru
          _
        // Predicated region
        $region41: #{tpu_custom_call.1} parent=11 // pred_check
          %p323 = pneg %p240
        $region42: #{tpu_custom_call.1} parent=11 // pred_check_branch
          %325 = sbr.rel (%p323) target = $region44
        $region43: #{tpu_custom_call.1} parent=11 // pred_region
          _
        $region44: #{tpu_custom_call.1} parent=11 // pred_fallthru
          _
        // Predicated region
        $region45: #{tpu_custom_call.1} parent=11 // pred_check
          %p326 = pneg %p261
        $region46: #{tpu_custom_call.1} parent=11 // pred_check_branch
          %328 = sbr.rel (%p326) target = $region48
        $region47: #{tpu_custom_call.1} parent=11 // pred_region
          _
        $region48: #{tpu_custom_call.1} parent=11 // pred_fallthru
          _
      $region12: #{tpu_custom_call.1} parent=5 // pred_fallthru
        _
      %p329 = scmp.lt.s32.totalorder %s20, 2
      // Predicated region
      $region49: #{tpu_custom_call.1} parent=5 // pred_check
        %p330 = pneg %p329
      $region50: #{tpu_custom_call.1} parent=5 // pred_check_branch
        %332 = sbr.rel (%p330) target = $region52
      $region51: #{tpu_custom_call.1} parent=5 // pred_region
        // Predicated region
        $region53: #{tpu_custom_call.1} parent=51 // pred_check
          %p333 = pneg %p40
        $region54: #{tpu_custom_call.1} parent=51 // pred_check_branch
          %335 = sbr.rel (%p333) target = $region56
        $region55: #{tpu_custom_call.1} parent=51 // pred_region
          %p336 = scmp.lt.s32.totalorder %s20, 1
          %s337 = scalar_select %p336, %s20, 1
          %s338 = smul.addr %s337, 2
          %s339 = smul.addr %s338, 2
          %s340 = scalar_lea.vmem %s0, %s339
        $region56: #{tpu_custom_call.1} parent=51 // pred_fallthru
          _
        // Predicated region
        $region57: #{tpu_custom_call.1} parent=51 // pred_check
          %p341 = pneg %p66
        $region58: #{tpu_custom_call.1} parent=51 // pred_check_branch
          %343 = sbr.rel (%p341) target = $region60
        $region59: #{tpu_custom_call.1} parent=51 // pred_region
          %p344 = scmp.lt.s32.totalorder %s20, 1
          %s345 = scalar_select %p344, %s20, 1
          %s346 = smul.addr %s345, 2
          %s347 = smul.addr %s346, 2
          %s348 = scalar_lea.vmem %s1, %s347
        $region60: #{tpu_custom_call.1} parent=51 // pred_fallthru
          _
      $region52: #{tpu_custom_call.1} parent=5 // pred_fallthru
        _
      %p349 = scmp.le.s32.totalorder 1, %s20
      %p350 = scmp.lt.s32.totalorder %s20, 3
      %p351 = pnand %p349, %p350
      %p352 = pneg %p351
      // Predicated region
      $region61: #{tpu_custom_call.1} parent=5 // pred_check
        _
      $region62: #{tpu_custom_call.1} parent=5 // pred_check_branch
        %354 = sbr.rel (%p351) target = $region64
      $region63: #{tpu_custom_call.1} parent=5 // pred_region
        %s355 = ssub.s32 %s20, 1
        %p356 = scmp.lt.s32.totalorder %s25, 1
        %s357 = scalar_select %p356, %s25, 1
        %s358 = smul.addr %s357, 2
        %s359 = smul.addr %s358, 2
        %s360 = scalar_lea.vmem %s0, %s359
        %p361 = pneg %p46
        %p362 = pneg %p43
        %p363 = scmp.lt.s32.totalorder %s25, 1
        %s364 = scalar_select %p363, %s25, 1
        %s365 = smul.addr %s364, 2
        %s366 = smul.addr %s365, 2
        %s367 = scalar_lea.vmem %s1, %s366
        %p368 = pneg %p72
        %p369 = pneg %p69
        %p370 = pneg %p93
        %p371 = pneg %p90
        %p372 = pneg %p114
        %p373 = pneg %p111
        %p374 = pneg %p135
        %p375 = pneg %p132
        %p376 = pneg %p156
        %p377 = pneg %p153
        %p378 = pneg %p177
        %p379 = pneg %p174
        %p380 = pneg %p198
        %p381 = pneg %p195
        %p382 = pneg %p219
        %p383 = pneg %p216
        %p384 = pneg %p240
        %p385 = pneg %p237
        %p386 = pneg %p261
        %p387 = pneg %p258
        %p388 = pneg %p287
        %p389 = pneg %p284
        %s390 = sand.u32 %s274, 1
        %s391 = scalar_lea.sflag [#allocation7], %s390
        %s392 = sand.u32 %s274, 1
        %s393 = smul.addr %s392, 4
        %s394 = scalar_lea.vmem [#allocation6], %s393
        %p395 = scmp.lt.s32.totalorder %s25, 1
        %s396 = scalar_select %p395, %s25, 1
        %s397 = smul.addr %s396, 2
        %s398 = smul.addr %s397, 2
        %s399 = scalar_lea.vmem %s0, %s398
        %p400 = scmp.lt.s32.totalorder %s25, 1
        %s401 = scalar_select %p400, %s25, 1
        %s402 = smul.addr %s401, 2
        %s403 = smul.addr %s402, 2
        %s404 = scalar_lea.vmem %s1, %s403
        %406 = vst [vmem:[#allocation2] sm:$0x3] 0
        %407 = vst [vmem:[#allocation2 + $0x6] sm:$0x3] 0
        %408 = vst [vmem:[#allocation3] sm:$0xff] 0
        %409 = vst [vmem:[#allocation3 + $0x20] sm:$0xff] 0
        %410 = vst [vmem:[#allocation3 + $0x18] sm:$0xff] 0
        %411 = vst [vmem:[#allocation3 + $0x38] sm:$0xff] 0
        %v412 = vld [vmem:[%s399] sm:$0xf]
        %v415 = vunpack.c.l.s4 1983009808
        %v416 = vunpack.c.0.s8 %v415
        %v417 = vlaneseq
        %v418 = vshrl.u32 %v417, 7
        %v419 = vsub.s32 %v416, %v418
        %v420 = vrot.slane %v412, %v419
        %v421 = vcombine.high %v420, %v420
        %v424 = vpack.c.bf16 %v420, %v420
        %v425 = vpack.c.bf16 %v421, %v421
        %v428 = vcombine.low %v424, %v425
        %v430 = vunpack.c.l.s4 1983009808
        %v431 = vunpack.c.0.s8 %v430
        %v432 = vlaneseq
        %v433 = vshrl.u32 %v432, 7
        %v434 = vsub.s32 %v431, %v433
        %v435 = vrot.slane %v428, %v434
        %437 = vst [vmem:[#allocation2 + $0x2] sm:$0x5] %v435
        %v438 = vld [vmem:[%s404] sm:$0xf]
        %v441 = vunpack.c.l.s4 1983009808
        %v442 = vunpack.c.0.s8 %v441
        %v443 = vlaneseq
        %v444 = vshrl.u32 %v443, 7
        %v445 = vsub.s32 %v442, %v444
        %v446 = vrot.slane %v438, %v445
        %v447 = vcombine.high %v446, %v446
        %v450 = vpack.c.bf16 %v446, %v446
        %v451 = vpack.c.bf16 %v447, %v447
        %v454 = vcombine.low %v450, %v451
        %v456 = vunpack.c.l.s4 1983009808
        %v457 = vunpack.c.0.s8 %v456
        %v458 = vlaneseq
        %v459 = vshrl.u32 %v458, 7
        %v460 = vsub.s32 %v457, %v459
        %v461 = vrot.slane %v454, %v460
        %v462 = vrot.slane %v461, 7
        %464 = vst [vmem:[#allocation2 + $0x2] sm:$0xa] %v462
        %v465 = vld [vmem:[#allocation2] sm:$0x3f]
        %v466 = vld [vmem:[%s2] sm:$0x5]
        %v469 = vunpack.c.l.s4 1983009808
        %v470 = vunpack.c.0.s8 %v469
        %v471 = vlaneseq
        %v472 = vshrl.u32 %v471, 7
        %v473 = vsub.s32 %v470, %v472
        %v474 = vrot.slane %v466, %v473
        %v475 = vcombine.high %v474, %v474
        %v477 = vpack.i.b16 %v474, %v474
        %v479 = vlaneseq
        %v480 = vshrl.u32 %v479, 7
        %v481 = vsub.s32 0, %v480
        %v482 = vrot.slane %v477, %v481
        %v484 = vpack.i.b16 %v475, %v475
        %v486 = vlaneseq
        %v487 = vshrl.u32 %v486, 7
        %v488 = vsub.s32 0, %v487
        %v489 = vrot.slane %v484, %v488
        %v492 = vcombine.low %v482, %v489
        %v494 = vunpack.c.l.s4 1983009808
        %v495 = vunpack.c.0.s8 %v494
        %v496 = vlaneseq
        %v497 = vshrl.u32 %v496, 7
        %v498 = vsub.s32 %v495, %v497
        %v499 = vrot.slane %v492, %v498
        %500 = vrot.lane.b32.xlu0 %v499, 111
        %v501 = vpop.permute.xlu0 %500
        %v502 = vrot.slane %v501, 6
        %vm503 = vcmask 908288
        %v504 = vsel %vm503, %v502, %v501
        %v506 = vmul.bf16 %v465, %v504
        %v508 = vcombine.high %v506, %v506
        %v510 = vunpack.c.l.s4 1983009808
        %v511 = vunpack.c.0.s8 %v510
        %v512 = vlaneseq
        %v513 = vshrl.u32 %v512, 7
        %v514 = vsub.s32 %v511, %v513
        %v515 = vrot.slane %v506, %v514
        %v517 = vunpack.c.l.s4 1983009808
        %v518 = vunpack.c.0.s8 %v517
        %v519 = vlaneseq
        %v520 = vshrl.u32 %v519, 7
        %v521 = vsub.s32 %v518, %v520
        %v522 = vrot.slane %v508, %v521
        %523 = vrot.lane.b32.xlu0 %v515, 17
        %v524 = vpop.permute.xlu0 %523
        %525 = vrot.lane.b32.xlu0 %v522, 17
        %v526 = vpop.permute.xlu0 %525
        %v527 = vrot.slane %v524, 4
        %v528 = vrot.slane %v526, 4
        %vm529 = vcmask 1043456
        %v530 = vsel %vm529, %v527, %v528
        %vm531 = vcmask 138240
        %v532 = vsel %vm531, %v524, %v530
        %534 = vst [vmem:[#allocation4] sm:$0x33] %v532
        %v535 = vld [vmem:[#allocation2] sm:$0x3f]
        %v537 = vcombine.low %v535, %v535
        %v539 = vunpack.c.l.s4 1983009808
        %v540 = vunpack.c.0.s8 %v539
        %v541 = vlaneseq
        %v542 = vshrl.u32 %v541, 7
        %v543 = vsub.s32 %v540, %v542
        %v544 = vrot.slane %v537, %v543
        %v546 = vunpack.c.l.s4 1983009808
        %v547 = vunpack.c.0.s8 %v546
        %v548 = vlaneseq
        %v549 = vshrl.u32 %v548, 7
        %v550 = vsub.s32 %v547, %v549
        %v551 = vrot.slane %v535, %v550
        %552 = vrot.lane.b32.xlu0 %v544, 16
        %v553 = vpop.permute.xlu0 %552
        %554 = vrot.lane.b32.xlu0 %v551, 16
        %v555 = vpop.permute.xlu0 %554
        %v556 = vrot.slane %v553, 4
        %v557 = vrot.slane %v555, 4
        %v558 = vsel %vm529, %v556, %v557
        %vm559 = vcmask 130048
        %v560 = vsel %vm559, %v553, %v558
        %562 = vst [vmem:[#allocation4] sm:$0xcc] %v560
        %v563 = vld [vmem:[#allocation2] sm:$0x3f]
        %v564 = vld [vmem:[%s2] sm:$0xa]
        %v567 = vunpack.c.l.s4 1983009808
        %v568 = vunpack.c.0.s8 %v567
        %v569 = vlaneseq
        %v570 = vshrl.u32 %v569, 7
        %v571 = vsub.s32 %v568, %v570
        %v572 = vrot.slane %v564, %v571
        %v573 = vcombine.high %v572, %v572
        %v575 = vpack.i.b16 %v572, %v572
        %v577 = vlaneseq
        %v578 = vshrl.u32 %v577, 7
        %v579 = vsub.s32 1, %v578
        %v580 = vrot.slane %v575, %v579
        %v582 = vpack.i.b16 %v573, %v573
        %v584 = vlaneseq
        %v585 = vshrl.u32 %v584, 7
        %v586 = vsub.s32 1, %v585
        %v587 = vrot.slane %v582, %v586
        %v590 = vcombine.low %v580, %v587
        %v592 = vunpack.c.l.s4 1983009808
        %v593 = vunpack.c.0.s8 %v592
        %v594 = vlaneseq
        %v595 = vshrl.u32 %v594, 7
        %v596 = vsub.s32 %v593, %v595
        %v597 = vrot.slane %v590, %v596
        %598 = vrot.lane.b32.xlu0 %v597, 113
        %v599 = vpop.permute.xlu0 %598
        %v600 = vrot.slane %v599, 6
        %vm601 = vcmask 924672
        %v602 = vsel %vm601, %v600, %v599
        %v604 = vmul.bf16 %v563, %v602
        %v606 = vcombine.high %v604, %v604
        %v608 = vunpack.c.l.s4 1983009808
        %v609 = vunpack.c.0.s8 %v608
        %v610 = vlaneseq
        %v611 = vshrl.u32 %v610, 7
        %v612 = vsub.s32 %v609, %v611
        %v613 = vrot.slane %v604, %v612
        %v615 = vunpack.c.l.s4 1983009808
        %v616 = vunpack.c.0.s8 %v615
        %v617 = vlaneseq
        %v618 = vshrl.u32 %v617, 7
        %v619 = vsub.s32 %v616, %v618
        %v620 = vrot.slane %v606, %v619
        %621 = vrot.lane.b32.xlu0 %v613, 15
        %v622 = vpop.permute.xlu0 %621
        %623 = vrot.lane.b32.xlu0 %v620, 15
        %v624 = vpop.permute.xlu0 %623
        %v625 = vrot.slane %v622, 4
        %v626 = vrot.slane %v624, 4
        %v627 = vsel %vm529, %v625, %v626
        %vm628 = vcmask 121856
        %v629 = vsel %vm628, %v622, %v627
        %631 = vst [vmem:[#allocation4 + $0x8] sm:$0x33] %v629
        %v632 = vld [vmem:[#allocation2] sm:$0x3f]
        %v633 = vld [vmem:[%s2] sm:$0x5]
        %v636 = vunpack.c.l.s4 1983009808
        %v637 = vunpack.c.0.s8 %v636
        %v638 = vlaneseq
        %v639 = vshrl.u32 %v638, 7
        %v640 = vsub.s32 %v637, %v639
        %v641 = vrot.slane %v633, %v640
        %v642 = vcombine.high %v641, %v641
        %v644 = vpack.i.b16 %v641, %v641
        %v646 = vlaneseq
        %v647 = vshrl.u32 %v646, 7
        %v648 = vsub.s32 0, %v647
        %v649 = vrot.slane %v644, %v648
        %v651 = vpack.i.b16 %v642, %v642
        %v653 = vlaneseq
        %v654 = vshrl.u32 %v653, 7
        %v655 = vsub.s32 0, %v654
        %v656 = vrot.slane %v651, %v655
        %v659 = vcombine.low %v649, %v656
        %v661 = vunpack.c.l.s4 1983009808
        %v662 = vunpack.c.0.s8 %v661
        %v663 = vlaneseq
        %v664 = vshrl.u32 %v663, 7
        %v665 = vsub.s32 %v662, %v664
        %v666 = vrot.slane %v659, %v665
        %667 = vrot.lane.b32.xlu0 %v666, 127
        %v668 = vpop.permute.xlu0 %667
        %v669 = vrot.slane %v668, 6
        %vm670 = vcmask 1039360
        %v671 = vsel %vm670, %v669, %v668
        %v673 = vmul.bf16 %v632, %v671
        %v675 = vcombine.low %v673, %v673
        %v677 = vunpack.c.l.s4 1983009808
        %v678 = vunpack.c.0.s8 %v677
        %v679 = vlaneseq
        %v680 = vshrl.u32 %v679, 7
        %v681 = vsub.s32 %v678, %v680
        %v682 = vrot.slane %v675, %v681
        %v684 = vunpack.c.l.s4 1983009808
        %v685 = vunpack.c.0.s8 %v684
        %v686 = vlaneseq
        %v687 = vshrl.u32 %v686, 7
        %v688 = vsub.s32 %v685, %v687
        %v689 = vrot.slane %v673, %v688
        %690 = vrot.lane.b32.xlu0 %v682, 1
        %v691 = vpop.permute.xlu0 %690
        %692 = vrot.lane.b32.xlu0 %v689, 1
        %v693 = vpop.permute.xlu0 %692
        %v694 = vrot.slane %v691, 4
        %v695 = vrot.slane %v693, 4
        %v696 = vsel %vm529, %v694, %v695
        %vm697 = vcmask 7168
        %v698 = vsel %vm697, %v691, %v696
        %700 = vst [vmem:[#allocation4 + $0x8] sm:$0xcc] %v698
        %v701 = vld [vmem:[#allocation2 + $0x2] sm:$0xf]
        %v704 = vunpack.c.l.s4 1983009808
        %v705 = vunpack.c.0.s8 %v704
        %v706 = vlaneseq
        %v707 = vshrl.u32 %v706, 7
        %v708 = vsub.s32 %v705, %v707
        %v709 = vrot.slane %v701, %v708
        %711 = vst [vmem:[#allocation4 + $0x10] sm:$0x33] %v709
        %v712 = vld [vmem:[#allocation2 + $0x2] sm:$0x3f]
        %v713 = vld [vmem:[%s2] sm:$0xa]
        %v716 = vunpack.c.l.s4 1983009808
        %v717 = vunpack.c.0.s8 %v716
        %v718 = vlaneseq
        %v719 = vshrl.u32 %v718, 7
        %v720 = vsub.s32 %v717, %v719
        %v721 = vrot.slane %v713, %v720
        %v722 = vcombine.high %v721, %v721
        %v724 = vpack.i.b16 %v721, %v721
        %v726 = vlaneseq
        %v727 = vshrl.u32 %v726, 7
        %v728 = vsub.s32 1, %v727
        %v729 = vrot.slane %v724, %v728
        %v731 = vpack.i.b16 %v722, %v722
        %v733 = vlaneseq
        %v734 = vshrl.u32 %v733, 7
        %v735 = vsub.s32 1, %v734
        %v736 = vrot.slane %v731, %v735
        %v739 = vcombine.low %v729, %v736
        %v741 = vunpack.c.l.s4 1983009808
        %v742 = vunpack.c.0.s8 %v741
        %v743 = vlaneseq
        %v744 = vshrl.u32 %v743, 7
        %v745 = vsub.s32 %v742, %v744
        %v746 = vrot.slane %v739, %v745
        %747 = vrot.lane.b32.xlu0 %v746, 1
        %v748 = vpop.permute.xlu0 %747
        %v749 = vrot.slane %v748, 6
        %v750 = vsel %vm697, %v749, %v748
        %v752 = vmul.bf16 %v712, %v750
        %v754 = vcombine.low %v752, %v752
        %v756 = vunpack.c.l.s4 1983009808
        %v757 = vunpack.c.0.s8 %v756
        %v758 = vlaneseq
        %v759 = vshrl.u32 %v758, 7
        %v760 = vsub.s32 %v757, %v759
        %v761 = vrot.slane %v754, %v760
        %v763 = vunpack.c.l.s4 1983009808
        %v764 = vunpack.c.0.s8 %v763
        %v765 = vlaneseq
        %v766 = vshrl.u32 %v765, 7
        %v767 = vsub.s32 %v764, %v766
        %v768 = vrot.slane %v752, %v767
        %769 = vrot.lane.b32.xlu0 %v761, 127
        %v770 = vpop.permute.xlu0 %769
        %771 = vrot.lane.b32.xlu0 %v768, 127
        %v772 = vpop.permute.xlu0 %771
        %v773 = vrot.slane %v770, 4
        %v774 = vrot.slane %v772, 4
        %v775 = vsel %vm529, %v773, %v774
        %v776 = vsel %vm670, %v770, %v775
        %778 = vst [vmem:[#allocation4 + $0x10] sm:$0xcc] %v776
        %v779 = vld [vmem:[#allocation2 + $0x2] sm:$0x3f]
        %v780 = vld [vmem:[%s2] sm:$0x5]
        %v783 = vunpack.c.l.s4 1983009808
        %v784 = vunpack.c.0.s8 %v783
        %v785 = vlaneseq
        %v786 = vshrl.u32 %v785, 7
        %v787 = vsub.s32 %v784, %v786
        %v788 = vrot.slane %v780, %v787
        %v789 = vcombine.high %v788, %v788
        %v791 = vpack.i.b16 %v788, %v788
        %v793 = vlaneseq
        %v794 = vshrl.u32 %v793, 7
        %v795 = vsub.s32 0, %v794
        %v796 = vrot.slane %v791, %v795
        %v798 = vpack.i.b16 %v789, %v789
        %v800 = vlaneseq
        %v801 = vshrl.u32 %v800, 7
        %v802 = vsub.s32 0, %v801
        %v803 = vrot.slane %v798, %v802
        %v806 = vcombine.low %v796, %v803
        %v808 = vunpack.c.l.s4 1983009808
        %v809 = vunpack.c.0.s8 %v808
        %v810 = vlaneseq
        %v811 = vshrl.u32 %v810, 7
        %v812 = vsub.s32 %v809, %v811
        %v813 = vrot.slane %v806, %v812
        %814 = vrot.lane.b32.xlu0 %v813, 15
        %v815 = vpop.permute.xlu0 %814
        %v816 = vrot.slane %v815, 6
        %v817 = vsel %vm628, %v816, %v815
        %v819 = vmul.bf16 %v779, %v817
        %v821 = vcombine.high %v819, %v819
        %v823 = vunpack.c.l.s4 1983009808
        %v824 = vunpack.c.0.s8 %v823
        %v825 = vlaneseq
        %v826 = vshrl.u32 %v825, 7
        %v827 = vsub.s32 %v824, %v826
        %v828 = vrot.slane %v819, %v827
        %v830 = vunpack.c.l.s4 1983009808
        %v831 = vunpack.c.0.s8 %v830
        %v832 = vlaneseq
        %v833 = vshrl.u32 %v832, 7
        %v834 = vsub.s32 %v831, %v833
        %v835 = vrot.slane %v821, %v834
        %836 = vrot.lane.b32.xlu0 %v828, 113
        %v837 = vpop.permute.xlu0 %836
        %838 = vrot.lane.b32.xlu0 %v835, 113
        %v839 = vpop.permute.xlu0 %838
        %v840 = vrot.slane %v837, 4
        %v841 = vrot.slane %v839, 4
        %v842 = vsel %vm529, %v840, %v841
        %v843 = vsel %vm601, %v837, %v842
        %845 = vst [vmem:[#allocation4 + $0x18] sm:$0x33] %v843
        %v846 = vld [vmem:[#allocation2 + $0x2] sm:$0x3f]
        %v848 = vcombine.low %v846, %v846
        %v850 = vunpack.c.l.s4 1983009808
        %v851 = vunpack.c.0.s8 %v850
        %v852 = vlaneseq
        %v853 = vshrl.u32 %v852, 7
        %v854 = vsub.s32 %v851, %v853
        %v855 = vrot.slane %v848, %v854
        %v857 = vunpack.c.l.s4 1983009808
        %v858 = vunpack.c.0.s8 %v857
        %v859 = vlaneseq
        %v860 = vshrl.u32 %v859, 7
        %v861 = vsub.s32 %v858, %v860
        %v862 = vrot.slane %v846, %v861
        %863 = vrot.lane.b32.xlu0 %v855, 112
        %v864 = vpop.permute.xlu0 %863
        %865 = vrot.lane.b32.xlu0 %v862, 112
        %v866 = vpop.permute.xlu0 %865
        %v867 = vrot.slane %v864, 4
        %v868 = vrot.slane %v866, 4
        %v869 = vsel %vm529, %v867, %v868
        %vm870 = vcmask 916480
        %v871 = vsel %vm870, %v864, %v869
        %873 = vst [vmem:[#allocation4 + $0x18] sm:$0xcc] %v871
        %v874 = vld [vmem:[#allocation2 + $0x2] sm:$0x3f]
        %v875 = vld [vmem:[%s2] sm:$0xa]
        %v878 = vunpack.c.l.s4 1983009808
        %v879 = vunpack.c.0.s8 %v878
        %v880 = vlaneseq
        %v881 = vshrl.u32 %v880, 7
        %v882 = vsub.s32 %v879, %v881
        %v883 = vrot.slane %v875, %v882
        %v884 = vcombine.high %v883, %v883
        %v886 = vpack.i.b16 %v883, %v883
        %v888 = vlaneseq
        %v889 = vshrl.u32 %v888, 7
        %v890 = vsub.s32 1, %v889
        %v891 = vrot.slane %v886, %v890
        %v893 = vpack.i.b16 %v884, %v884
        %v895 = vlaneseq
        %v896 = vshrl.u32 %v895, 7
        %v897 = vsub.s32 1, %v896
        %v898 = vrot.slane %v893, %v897
        %v901 = vcombine.low %v891, %v898
        %v903 = vunpack.c.l.s4 1983009808
        %v904 = vunpack.c.0.s8 %v903
        %v905 = vlaneseq
        %v906 = vshrl.u32 %v905, 7
        %v907 = vsub.s32 %v904, %v906
        %v908 = vrot.slane %v901, %v907
        %909 = vrot.lane.b32.xlu0 %v908, 17
        %v910 = vpop.permute.xlu0 %909
        %v911 = vrot.slane %v910, 6
        %v912 = vsel %vm531, %v911, %v910
        %v914 = vmul.bf16 %v874, %v912
        %v916 = vcombine.high %v914, %v914
        %v918 = vunpack.c.l.s4 1983009808
        %v919 = vunpack.c.0.s8 %v918
        %v920 = vlaneseq
        %v921 = vshrl.u32 %v920, 7
        %v922 = vsub.s32 %v919, %v921
        %v923 = vrot.slane %v914, %v922
        %v925 = vunpack.c.l.s4 1983009808
        %v926 = vunpack.c.0.s8 %v925
        %v927 = vlaneseq
        %v928 = vshrl.u32 %v927, 7
        %v929 = vsub.s32 %v926, %v928
        %v930 = vrot.slane %v916, %v929
        %931 = vrot.lane.b32.xlu0 %v923, 111
        %v932 = vpop.permute.xlu0 %931
        %933 = vrot.lane.b32.xlu0 %v930, 111
        %v934 = vpop.permute.xlu0 %933
        %v935 = vrot.slane %v932, 4
        %v936 = vrot.slane %v934, 4
        %v937 = vsel %vm529, %v935, %v936
        %v938 = vsel %vm503, %v932, %v937
        %940 = vst [vmem:[#allocation4 + $0x20] sm:$0x33] %v938
        %v941 = vld [vmem:[%s3] sm:$0xf]
        %v942 = vld [vmem:[%s3 + $0x4] sm:$0xf]
        %v943 = vld [vmem:[%s3 + $0x8] sm:$0xf]
        %v944 = vld [vmem:[%s3 + $0xc] sm:$0xf]
        %v945 = vld [vmem:[#allocation4] sm:$0xff]
        %v946 = vld [vmem:[#allocation4 + $0x8] sm:$0xff]
        %v947 = vld [vmem:[#allocation4 + $0x10] sm:$0xff]
        %v948 = vld [vmem:[#allocation4 + $0x18] sm:$0xff]
        %v949 = vld [vmem:[#allocation4 + $0x20] sm:$0x33]
        %v950 = vld [vmem:[%s4] sm:$0xff]
        %v951 = vld [vmem:[%s4 + $0x8] sm:$0xff]
        %v952 = vld [vmem:[%s4 + $0x10] sm:$0xff]
        %v953 = vld [vmem:[%s4 + $0x18] sm:$0xff]
        %955 = vset.pattern.permute.xlu0 0
        %956 = vperm.xlu0 %955, %v950
        %v957 = vpop.permute.xlu0 %956
        %960 = vset.pattern.permute.xlu0 0
        %961 = vperm.xlu0 %960, %v951
        %v962 = vpop.permute.xlu0 %961
        %965 = vset.pattern.permute.xlu0 0
        %966 = vperm.xlu0 %965, %v952
        %v967 = vpop.permute.xlu0 %966
        %970 = vset.pattern.permute.xlu0 0
        %971 = vperm.xlu0 %970, %v953
        %v972 = vpop.permute.xlu0 %971
        %v978 = vunpack.c.l.b16 %v941
        %v979 = vunpack.c.l.b16 %v942
        %v980 = vunpack.c.l.b16 %v943
        %v981 = vunpack.c.l.b16 %v944
        %v982 = vpack.c.b16 %v979, %v978
        %v983 = vpack.c.b16 %v981, %v980
        %v989 = vunpack.c.l.b16 %v945
        %v990 = vunpack.c.h.b16 %v945
        %v991 = vunpack.c.l.b16 %v946
        %v992 = vunpack.c.h.b16 %v946
        %v993 = vunpack.c.l.b16 %v947
        %v994 = vunpack.c.h.b16 %v947
        %v995 = vunpack.c.l.b16 %v948
        %v996 = vunpack.c.h.b16 %v948
        %v997 = vunpack.c.l.b16 %v949
        %v998 = vunpack.c.h.b16 %v949
        %v999 = vpack.c.b16 %v991, %v989
        %v1000 = vpack.c.b16 %v992, %v990
        %v1001 = vpack.c.b16 %v995, %v993
        %v1002 = vpack.c.b16 %v996, %v994
        %v1003 = vpack.c.b16 %v997, %v997
        %v1004 = vpack.c.b16 %v998, %v998
        %vm1009 = vcmask 293888
        %v1011 = vsel %vm1009, %v982, 0
        %v1014 = vsel %vm1009, %v983, 0
        %vm1016 = vcmask 1041408
        %v1018 = vsel %vm1016, %v1003, 0
        %v1021 = vsel %vm1016, %v1004, 0
        %1023 = vmatprep.subr.bf16.mxu0 %v1000
        %1024 = vmatpush1.bf16.msra.mxu0 %v999
        %1025 = vmatprep.subr.bf16.mxu0 %v1002
        %1026 = vmatpush1.bf16.msra.mxu0 %v1001
        %1027 = vmatprep.subr.bf16.mxu0 %v1021
        %1028 = vmatpush1.bf16.msra.mxu0 %v1018
        %1029 = vmatprep.subr.bf16.mxu0 0
        %1030 = vmatpush1.bf16.msra.mxu0 0
        %1031 = vmatprep.subr.bf16.mxu0 0
        %1032 = vmatpush1.bf16.msra.mxu0 0
        %1033 = vmatprep.subr.bf16.mxu0 0
        %1034 = vmatpush1.bf16.msra.mxu0 0
        %1035 = vmatprep.subr.bf16.mxu0 0
        %1036 = vmatpush1.bf16.msra.mxu0 0
        %1037 = vmatprep.subr.bf16.mxu0 0
        %1038 = vmatpush1.bf16.msra.mxu0 0
        %1039 = vmatprep.subr.bf16.mxu0 0
        %1040 = vmatpush1.bf16.msra.mxu0 0
        %1041 = vmatprep.subr.bf16.mxu0 0
        %1042 = vmatpush1.bf16.msra.mxu0 0
        %1043 = vmatprep.subr.bf16.mxu0 0
        %1044 = vmatpush1.bf16.msra.mxu0 0
        %1045 = vmatprep.subr.bf16.mxu0 0
        %1046 = vmatpush1.bf16.msra.mxu0 0
        %1047 = vmatprep.subr.bf16.mxu0 0
        %1048 = vmatpush1.bf16.msra.mxu0 0
        %1049 = vmatprep.subr.bf16.mxu0 0
        %1050 = vmatpush1.bf16.msra.mxu0 0
        %1051 = vmatprep.subr.bf16.mxu0 0
        %1052 = vmatpush1.bf16.msra.mxu0 0
        %1053 = vmatprep.subr.bf16.mxu0 0
        %1054 = vmatpush1.bf16.msra.mxu0 0
        %1055 = vmatprep.mubr.bf16.mxu0 0
        %1056 = vmatmul.mubr.bf16.gmra.mrb[0].mxu0 %v1011
        %v1057 = vpop.f32.mrb[0].mxu0
        %v1058 = vadd.f32 %v957, %v1057
        %v1059 = vpop.f32.mrb[0].mxu0
        %v1060 = vadd.f32 %v957, %v1059
        %v1061 = vpop.f32.mrb[0].mxu0
        %v1062 = vadd.f32 %v962, %v1061
        %v1063 = vpop.f32.mrb[0].mxu0
        %v1064 = vadd.f32 %v962, %v1063
        %1065 = vmatprep.mubr.bf16.mxu0 0
        %1066 = vmatmul.mubr.bf16.gmra.mrb[0].mxu0 %v1014
        %v1067 = vpop.f32.mrb[0].mxu0
        %v1068 = vadd.f32 %v967, %v1067
        %v1069 = vpop.f32.mrb[0].mxu0
        %v1070 = vadd.f32 %v967, %v1069
        %v1071 = vpop.f32.mrb[0].mxu0
        %v1072 = vadd.f32 %v972, %v1071
        %v1073 = vpop.f32.mrb[0].mxu0
        %v1074 = vadd.f32 %v972, %v1073
        %1075 = vdwg.mxu0
        %vm1076 = vcmp.ge.f32.partialorder %v1058, 0.0
        %vm1077 = vcmp.ge.f32.partialorder %v1060, 0.0
        %vm1078 = vcmp.ge.f32.partialorder %v1062, 0.0
        %vm1079 = vcmp.ge.f32.partialorder %v1064, 0.0
        %vm1080 = vcmp.ge.f32.partialorder %v1068, 0.0
        %vm1081 = vcmp.ge.f32.partialorder %v1070, 0.0
        %vm1082 = vcmp.ge.f32.partialorder %v1072, 0.0
        %vm1083 = vcmp.ge.f32.partialorder %v1074, 0.0
        %v1084 = vld [vmem:[%s5] sm:$0xff]
        %v1085 = vld [vmem:[%s5 + $0x8] sm:$0xff]
        %v1086 = vld [vmem:[%s5 + $0x10] sm:$0xff]
        %v1087 = vld [vmem:[%s5 + $0x18] sm:$0xff]
        %1089 = vset.pattern.permute.xlu0 0
        %1090 = vperm.xlu0 %1089, %v1084
        %v1091 = vpop.permute.xlu0 %1090
        %1094 = vset.pattern.permute.xlu0 0
        %1095 = vperm.xlu0 %1094, %v1085
        %v1096 = vpop.permute.xlu0 %1095
        %1099 = vset.pattern.permute.xlu0 0
        %1100 = vperm.xlu0 %1099, %v1086
        %v1101 = vpop.permute.xlu0 %1100
        %1104 = vset.pattern.permute.xlu0 0
        %1105 = vperm.xlu0 %1104, %v1087
        %v1106 = vpop.permute.xlu0 %1105
        %v1108 = vmul.f32 %v1091, %v1058
        %v1109 = vmul.f32 %v1091, %v1060
        %v1110 = vmul.f32 %v1096, %v1062
        %v1111 = vmul.f32 %v1096, %v1064
        %v1112 = vmul.f32 %v1101, %v1068
        %v1113 = vmul.f32 %v1101, %v1070
        %v1114 = vmul.f32 %v1106, %v1072
        %v1115 = vmul.f32 %v1106, %v1074
        %v1116 = vsel %vm1076, %v1058, %v1108
        %v1117 = vsel %vm1077, %v1060, %v1109
        %v1118 = vsel %vm1078, %v1062, %v1110
        %v1119 = vsel %vm1079, %v1064, %v1111
        %v1120 = vsel %vm1080, %v1068, %v1112
        %v1121 = vsel %vm1081, %v1070, %v1113
        %v1122 = vsel %vm1082, %v1072, %v1114
        %v1123 = vsel %vm1083, %v1074, %v1115
        %v1124 = vpack.c.bf16 %v1118, %v1116
        %v1125 = vpack.c.bf16 %v1119, %v1117
        %v1126 = vpack.c.bf16 %v1122, %v1120
        %v1127 = vpack.c.bf16 %v1123, %v1121
        %1128 = vst [vmem:[#allocation3 + $0x8] sm:$0xff] %v1124
        %1129 = vst [vmem:[#allocation3 + $0x10] sm:$0xff] %v1125
        %1130 = vst [vmem:[#allocation3 + $0x28] sm:$0xff] %v1126
        %1131 = vst [vmem:[#allocation3 + $0x30] sm:$0xff] %v1127
        %v1132 = vld [vmem:[#allocation3] sm:$0xff]
        %v1133 = vld [vmem:[#allocation3 + $0x8] sm:$0xff]
        %v1134 = vld [vmem:[#allocation3 + $0x10] sm:$0xff]
        %v1135 = vld [vmem:[#allocation3 + $0x20] sm:$0xff]
        %v1136 = vld [vmem:[#allocation3 + $0x28] sm:$0xff]
        %v1137 = vld [vmem:[#allocation3 + $0x30] sm:$0xff]
        %v1138 = vld [vmem:[%s2] sm:$0x5]
        %v1141 = vunpack.c.l.s4 1983009808
        %v1142 = vunpack.c.0.s8 %v1141
        %v1143 = vlaneseq
        %v1144 = vshrl.u32 %v1143, 7
        %v1145 = vsub.s32 %v1142, %v1144
        %v1146 = vrot.slane %v1138, %v1145
        %v1147 = vcombine.high %v1146, %v1146
        %v1149 = vpack.i.b16 %v1146, %v1146
        %v1151 = vlaneseq
        %v1152 = vshrl.u32 %v1151, 7
        %v1153 = vsub.s32 0, %v1152
        %v1154 = vrot.slane %v1149, %v1153
        %v1156 = vpack.i.b16 %v1147, %v1147
        %v1158 = vlaneseq
        %v1159 = vshrl.u32 %v1158, 7
        %v1160 = vsub.s32 0, %v1159
        %v1161 = vrot.slane %v1156, %v1160
        %1164 = vrot.lane.b32.xlu0 %v1154, 111
        %v1165 = vpop.permute.xlu0 %1164
        %1166 = vrot.lane.b32.xlu0 %v1161, 111
        %v1167 = vpop.permute.xlu0 %1166
        %v1168 = vsel %vm503, %v1165, %v1167
        %v1172 = vmul.bf16 %v1132, %v1165
        %v1173 = vmul.bf16 %v1133, %v1168
        %v1174 = vmul.bf16 %v1134, %v1167
        %v1175 = vmul.bf16 %v1135, %v1165
        %v1176 = vmul.bf16 %v1136, %v1168
        %v1177 = vmul.bf16 %v1137, %v1167
        %1184 = vrot.lane.b32.xlu0 %v1172, 17
        %v1185 = vpop.permute.xlu0 %1184
        %1186 = vrot.lane.b32.xlu0 %v1173, 17
        %v1187 = vpop.permute.xlu0 %1186
        %1188 = vrot.lane.b32.xlu0 %v1174, 17
        %v1189 = vpop.permute.xlu0 %1188
        %1190 = vrot.lane.b32.xlu0 %v1175, 17
        %v1191 = vpop.permute.xlu0 %1190
        %1192 = vrot.lane.b32.xlu0 %v1176, 17
        %v1193 = vpop.permute.xlu0 %1192
        %1194 = vrot.lane.b32.xlu0 %v1177, 17
        %v1195 = vpop.permute.xlu0 %1194
        %v1196 = vsel %vm531, %v1185, %v1187
        %v1197 = vsel %vm531, %v1187, %v1189
        %v1198 = vsel %vm531, %v1191, %v1193
        %v1199 = vsel %vm531, %v1193, %v1195
        %1204 = vst [vmem:[#allocation5] sm:$0xff] %v1196
        %1205 = vst [vmem:[#allocation5 + $0x8] sm:$0xff] %v1197
        %1206 = vst [vmem:[#allocation5 + $0x10] sm:$0xff] %v1198
        %1207 = vst [vmem:[#allocation5 + $0x18] sm:$0xff] %v1199
        %v1208 = vld [vmem:[#allocation3] sm:$0xff]
        %v1209 = vld [vmem:[#allocation3 + $0x8] sm:$0xff]
        %v1210 = vld [vmem:[#allocation3 + $0x10] sm:$0xff]
        %v1211 = vld [vmem:[#allocation3 + $0x20] sm:$0xff]
        %v1212 = vld [vmem:[#allocation3 + $0x28] sm:$0xff]
        %v1213 = vld [vmem:[#allocation3 + $0x30] sm:$0xff]
        %1220 = vrot.lane.b32.xlu0 %v1208, 16
        %v1221 = vpop.permute.xlu0 %1220
        %1222 = vrot.lane.b32.xlu0 %v1209, 16
        %v1223 = vpop.permute.xlu0 %1222
        %1224 = vrot.lane.b32.xlu0 %v1210, 16
        %v1225 = vpop.permute.xlu0 %1224
        %1226 = vrot.lane.b32.xlu0 %v1211, 16
        %v1227 = vpop.permute.xlu0 %1226
        %1228 = vrot.lane.b32.xlu0 %v1212, 16
        %v1229 = vpop.permute.xlu0 %1228
        %1230 = vrot.lane.b32.xlu0 %v1213, 16
        %v1231 = vpop.permute.xlu0 %1230
        %v1232 = vsel %vm559, %v1221, %v1223
        %v1233 = vsel %vm559, %v1223, %v1225
        %v1234 = vsel %vm559, %v1227, %v1229
        %v1235 = vsel %vm559, %v1229, %v1231
        %1240 = vst [vmem:[#allocation5 + $0x20] sm:$0xff] %v1232
        %1241 = vst [vmem:[#allocation5 + $0x28] sm:$0xff] %v1233
        %1242 = vst [vmem:[#allocation5 + $0x30] sm:$0xff] %v1234
        %1243 = vst [vmem:[#allocation5 + $0x38] sm:$0xff] %v1235
        %v1244 = vld [vmem:[#allocation3] sm:$0xff]
        %v1245 = vld [vmem:[#allocation3 + $0x8] sm:$0xff]
        %v1246 = vld [vmem:[#allocation3 + $0x10] sm:$0xff]
        %v1247 = vld [vmem:[#allocation3 + $0x20] sm:$0xff]
        %v1248 = vld [vmem:[#allocation3 + $0x28] sm:$0xff]
        %v1249 = vld [vmem:[#allocation3 + $0x30] sm:$0xff]
        %v1250 = vld [vmem:[%s2] sm:$0xa]
        %v1253 = vunpack.c.l.s4 1983009808
        %v1254 = vunpack.c.0.s8 %v1253
        %v1255 = vlaneseq
        %v1256 = vshrl.u32 %v1255, 7
        %v1257 = vsub.s32 %v1254, %v1256
        %v1258 = vrot.slane %v1250, %v1257
        %v1259 = vcombine.high %v1258, %v1258
        %v1261 = vpack.i.b16 %v1258, %v1258
        %v1263 = vlaneseq
        %v1264 = vshrl.u32 %v1263, 7
        %v1265 = vsub.s32 1, %v1264
        %v1266 = vrot.slane %v1261, %v1265
        %v1268 = vpack.i.b16 %v1259, %v1259
        %v1270 = vlaneseq
        %v1271 = vshrl.u32 %v1270, 7
        %v1272 = vsub.s32 1, %v1271
        %v1273 = vrot.slane %v1268, %v1272
        %1276 = vrot.lane.b32.xlu0 %v1266, 113
        %v1277 = vpop.permute.xlu0 %1276
        %1278 = vrot.lane.b32.xlu0 %v1273, 113
        %v1279 = vpop.permute.xlu0 %1278
        %v1280 = vsel %vm601, %v1277, %v1279
        %v1284 = vmul.bf16 %v1244, %v1277
        %v1285 = vmul.bf16 %v1245, %v1280
        %v1286 = vmul.bf16 %v1246, %v1279
        %v1287 = vmul.bf16 %v1247, %v1277
        %v1288 = vmul.bf16 %v1248, %v1280
        %v1289 = vmul.bf16 %v1249, %v1279
        %1296 = vrot.lane.b32.xlu0 %v1284, 15
        %v1297 = vpop.permute.xlu0 %1296
        %1298 = vrot.lane.b32.xlu0 %v1285, 15
        %v1299 = vpop.permute.xlu0 %1298
        %1300 = vrot.lane.b32.xlu0 %v1286, 15
        %v1301 = vpop.permute.xlu0 %1300
        %1302 = vrot.lane.b32.xlu0 %v1287, 15
        %v1303 = vpop.permute.xlu0 %1302
        %1304 = vrot.lane.b32.xlu0 %v1288, 15
        %v1305 = vpop.permute.xlu0 %1304
        %1306 = vrot.lane.b32.xlu0 %v1289, 15
        %v1307 = vpop.permute.xlu0 %1306
        %v1308 = vsel %vm628, %v1297, %v1299
        %v1309 = vsel %vm628, %v1299, %v1301
        %v1310 = vsel %vm628, %v1303, %v1305
        %v1311 = vsel %vm628, %v1305, %v1307
        %1316 = vst [vmem:[#allocation5 + $0x40] sm:$0xff] %v1308
        %1317 = vst [vmem:[#allocation5 + $0x48] sm:$0xff] %v1309
        %1318 = vst [vmem:[#allocation5 + $0x50] sm:$0xff] %v1310
        %1319 = vst [vmem:[#allocation5 + $0x58] sm:$0xff] %v1311
        %v1320 = vld [vmem:[#allocation3] sm:$0xff]
        %v1321 = vld [vmem:[#allocation3 + $0x8] sm:$0xff]
        %v1322 = vld [vmem:[#allocation3 + $0x10] sm:$0xff]
        %v1323 = vld [vmem:[#allocation3 + $0x20] sm:$0xff]
        %v1324 = vld [vmem:[#allocation3 + $0x28] sm:$0xff]
        %v1325 = vld [vmem:[#allocation3 + $0x30] sm:$0xff]
        %v1326 = vld [vmem:[%s2] sm:$0x5]
        %v1329 = vunpack.c.l.s4 1983009808
        %v1330 = vunpack.c.0.s8 %v1329
        %v1331 = vlaneseq
        %v1332 = vshrl.u32 %v1331, 7
        %v1333 = vsub.s32 %v1330, %v1332
        %v1334 = vrot.slane %v1326, %v1333
        %v1335 = vcombine.high %v1334, %v1334
        %v1337 = vpack.i.b16 %v1334, %v1334
        %v1339 = vlaneseq
        %v1340 = vshrl.u32 %v1339, 7
        %v1341 = vsub.s32 0, %v1340
        %v1342 = vrot.slane %v1337, %v1341
        %v1344 = vpack.i.b16 %v1335, %v1335
        %v1346 = vlaneseq
        %v1347 = vshrl.u32 %v1346, 7
        %v1348 = vsub.s32 0, %v1347
        %v1349 = vrot.slane %v1344, %v1348
        %1352 = vrot.lane.b32.xlu0 %v1342, 127
        %v1353 = vpop.permute.xlu0 %1352
        %1354 = vrot.lane.b32.xlu0 %v1349, 127
        %v1355 = vpop.permute.xlu0 %1354
        %v1356 = vsel %vm670, %v1353, %v1355
        %v1360 = vmul.bf16 %v1320, %v1353
        %v1361 = vmul.bf16 %v1321, %v1356
        %v1362 = vmul.bf16 %v1322, %v1355
        %v1363 = vmul.bf16 %v1323, %v1353
        %v1364 = vmul.bf16 %v1324, %v1356
        %v1365 = vmul.bf16 %v1325, %v1355
        %1372 = vrot.lane.b32.xlu0 %v1360, 1
        %v1373 = vpop.permute.xlu0 %1372
        %1374 = vrot.lane.b32.xlu0 %v1361, 1
        %v1375 = vpop.permute.xlu0 %1374
        %1376 = vrot.lane.b32.xlu0 %v1362, 1
        %v1377 = vpop.permute.xlu0 %1376
        %1378 = vrot.lane.b32.xlu0 %v1363, 1
        %v1379 = vpop.permute.xlu0 %1378
        %1380 = vrot.lane.b32.xlu0 %v1364, 1
        %v1381 = vpop.permute.xlu0 %1380
        %1382 = vrot.lane.b32.xlu0 %v1365, 1
        %v1383 = vpop.permute.xlu0 %1382
        %v1384 = vsel %vm697, %v1373, %v1375
        %v1385 = vsel %vm697, %v1375, %v1377
        %v1386 = vsel %vm697, %v1379, %v1381
        %v1387 = vsel %vm697, %v1381, %v1383
        %1392 = vst [vmem:[#allocation5 + $0x60] sm:$0xff] %v1384
        %1393 = vst [vmem:[#allocation5 + $0x68] sm:$0xff] %v1385
        %1394 = vst [vmem:[#allocation5 + $0x70] sm:$0xff] %v1386
        %1395 = vst [vmem:[#allocation5 + $0x78] sm:$0xff] %v1387
        %v1396 = vld [vmem:[#allocation3 + $0x8] sm:$0xff]
        %v1397 = vld [vmem:[#allocation3 + $0x10] sm:$0xff]
        %v1398 = vld [vmem:[#allocation3 + $0x28] sm:$0xff]
        %v1399 = vld [vmem:[#allocation3 + $0x30] sm:$0xff]
        %1400 = vst [vmem:[#allocation5 + $0x80] sm:$0xff] %v1396
        %1401 = vst [vmem:[#allocation5 + $0x88] sm:$0xff] %v1397
        %1402 = vst [vmem:[#allocation5 + $0x90] sm:$0xff] %v1398
        %1403 = vst [vmem:[#allocation5 + $0x98] sm:$0xff] %v1399
        %v1404 = vld [vmem:[#allocation3 + $0x8] sm:$0xff]
        %v1405 = vld [vmem:[#allocation3 + $0x10] sm:$0xff]
        %v1406 = vld [vmem:[#allocation3 + $0x18] sm:$0xff]
        %v1407 = vld [vmem:[#allocation3 + $0x28] sm:$0xff]
        %v1408 = vld [vmem:[#allocation3 + $0x30] sm:$0xff]
        %v1409 = vld [vmem:[#allocation3 + $0x38] sm:$0xff]
        %v1410 = vld [vmem:[%s2] sm:$0xa]
        %v1413 = vunpack.c.l.s4 1983009808
        %v1414 = vunpack.c.0.s8 %v1413
        %v1415 = vlaneseq
        %v1416 = vshrl.u32 %v1415, 7
        %v1417 = vsub.s32 %v1414, %v1416
        %v1418 = vrot.slane %v1410, %v1417
        %v1419 = vcombine.high %v1418, %v1418
        %v1421 = vpack.i.b16 %v1418, %v1418
        %v1423 = vlaneseq
        %v1424 = vshrl.u32 %v1423, 7
        %v1425 = vsub.s32 1, %v1424
        %v1426 = vrot.slane %v1421, %v1425
        %v1428 = vpack.i.b16 %v1419, %v1419
        %v1430 = vlaneseq
        %v1431 = vshrl.u32 %v1430, 7
        %v1432 = vsub.s32 1, %v1431
        %v1433 = vrot.slane %v1428, %v1432
        %1436 = vrot.lane.b32.xlu0 %v1426, 1
        %v1437 = vpop.permute.xlu0 %1436
        %1438 = vrot.lane.b32.xlu0 %v1433, 1
        %v1439 = vpop.permute.xlu0 %1438
        %v1440 = vsel %vm697, %v1437, %v1439
        %v1444 = vmul.bf16 %v1404, %v1437
        %v1445 = vmul.bf16 %v1405, %v1440
        %v1446 = vmul.bf16 %v1406, %v1439
        %v1447 = vmul.bf16 %v1407, %v1437
        %v1448 = vmul.bf16 %v1408, %v1440
        %v1449 = vmul.bf16 %v1409, %v1439
        %1456 = vrot.lane.b32.xlu0 %v1444, 127
        %v1457 = vpop.permute.xlu0 %1456
        %1458 = vrot.lane.b32.xlu0 %v1445, 127
        %v1459 = vpop.permute.xlu0 %1458
        %1460 = vrot.lane.b32.xlu0 %v1446, 127
        %v1461 = vpop.permute.xlu0 %1460
        %1462 = vrot.lane.b32.xlu0 %v1447, 127
        %v1463 = vpop.permute.xlu0 %1462
        %1464 = vrot.lane.b32.xlu0 %v1448, 127
        %v1465 = vpop.permute.xlu0 %1464
        %1466 = vrot.lane.b32.xlu0 %v1449, 127
        %v1467 = vpop.permute.xlu0 %1466
        %v1468 = vsel %vm670, %v1457, %v1459
        %v1469 = vsel %vm670, %v1459, %v1461
        %v1470 = vsel %vm670, %v1463, %v1465
        %v1471 = vsel %vm670, %v1465, %v1467
        %1476 = vst [vmem:[#allocation5 + $0xa0] sm:$0xff] %v1468
        %1477 = vst [vmem:[#allocation5 + $0xa8] sm:$0xff] %v1469
        %1478 = vst [vmem:[#allocation5 + $0xb0] sm:$0xff] %v1470
        %1479 = vst [vmem:[#allocation5 + $0xb8] sm:$0xff] %v1471
        %v1480 = vld [vmem:[#allocation3 + $0x8] sm:$0xff]
        %v1481 = vld [vmem:[#allocation3 + $0x10] sm:$0xff]
        %v1482 = vld [vmem:[#allocation3 + $0x18] sm:$0xff]
        %v1483 = vld [vmem:[#allocation3 + $0x28] sm:$0xff]
        %v1484 = vld [vmem:[#allocation3 + $0x30] sm:$0xff]
        %v1485 = vld [vmem:[#allocation3 + $0x38] sm:$0xff]
        %v1486 = vld [vmem:[%s2] sm:$0x5]
        %v1489 = vunpack.c.l.s4 1983009808
        %v1490 = vunpack.c.0.s8 %v1489
        %v1491 = vlaneseq
        %v1492 = vshrl.u32 %v1491, 7
        %v1493 = vsub.s32 %v1490, %v1492
        %v1494 = vrot.slane %v1486, %v1493
        %v1495 = vcombine.high %v1494, %v1494
        %v1497 = vpack.i.b16 %v1494, %v1494
        %v1499 = vlaneseq
        %v1500 = vshrl.u32 %v1499, 7
        %v1501 = vsub.s32 0, %v1500
        %v1502 = vrot.slane %v1497, %v1501
        %v1504 = vpack.i.b16 %v1495, %v1495
        %v1506 = vlaneseq
        %v1507 = vshrl.u32 %v1506, 7
        %v1508 = vsub.s32 0, %v1507
        %v1509 = vrot.slane %v1504, %v1508
        %1512 = vrot.lane.b32.xlu0 %v1502, 15
        %v1513 = vpop.permute.xlu0 %1512
        %1514 = vrot.lane.b32.xlu0 %v1509, 15
        %v1515 = vpop.permute.xlu0 %1514
        %v1516 = vsel %vm628, %v1513, %v1515
        %v1520 = vmul.bf16 %v1480, %v1513
        %v1521 = vmul.bf16 %v1481, %v1516
        %v1522 = vmul.bf16 %v1482, %v1515
        %v1523 = vmul.bf16 %v1483, %v1513
        %v1524 = vmul.bf16 %v1484, %v1516
        %v1525 = vmul.bf16 %v1485, %v1515
        %1532 = vrot.lane.b32.xlu0 %v1520, 113
        %v1533 = vpop.permute.xlu0 %1532
        %1534 = vrot.lane.b32.xlu0 %v1521, 113
        %v1535 = vpop.permute.xlu0 %1534
        %1536 = vrot.lane.b32.xlu0 %v1522, 113
        %v1537 = vpop.permute.xlu0 %1536
        %1538 = vrot.lane.b32.xlu0 %v1523, 113
        %v1539 = vpop.permute.xlu0 %1538
        %1540 = vrot.lane.b32.xlu0 %v1524, 113
        %v1541 = vpop.permute.xlu0 %1540
        %1542 = vrot.lane.b32.xlu0 %v1525, 113
        %v1543 = vpop.permute.xlu0 %1542
        %v1544 = vsel %vm601, %v1533, %v1535
        %v1545 = vsel %vm601, %v1535, %v1537
        %v1546 = vsel %vm601, %v1539, %v1541
        %v1547 = vsel %vm601, %v1541, %v1543
        %1552 = vst [vmem:[#allocation5 + $0xc0] sm:$0xff] %v1544
        %1553 = vst [vmem:[#allocation5 + $0xc8] sm:$0xff] %v1545
        %1554 = vst [vmem:[#allocation5 + $0xd0] sm:$0xff] %v1546
        %1555 = vst [vmem:[#allocation5 + $0xd8] sm:$0xff] %v1547
        %v1556 = vld [vmem:[#allocation3 + $0x8] sm:$0xff]
        %v1557 = vld [vmem:[#allocation3 + $0x10] sm:$0xff]
        %v1558 = vld [vmem:[#allocation3 + $0x18] sm:$0xff]
        %v1559 = vld [vmem:[#allocation3 + $0x28] sm:$0xff]
        %v1560 = vld [vmem:[#allocation3 + $0x30] sm:$0xff]
        %v1561 = vld [vmem:[#allocation3 + $0x38] sm:$0xff]
        %1568 = vrot.lane.b32.xlu0 %v1556, 112
        %v1569 = vpop.permute.xlu0 %1568
        %1570 = vrot.lane.b32.xlu0 %v1557, 112
        %v1571 = vpop.permute.xlu0 %1570
        %1572 = vrot.lane.b32.xlu0 %v1558, 112
        %v1573 = vpop.permute.xlu0 %1572
        %1574 = vrot.lane.b32.xlu0 %v1559, 112
        %v1575 = vpop.permute.xlu0 %1574
        %1576 = vrot.lane.b32.xlu0 %v1560, 112
        %v1577 = vpop.permute.xlu0 %1576
        %1578 = vrot.lane.b32.xlu0 %v1561, 112
        %v1579 = vpop.permute.xlu0 %1578
        %v1580 = vsel %vm870, %v1569, %v1571
        %v1581 = vsel %vm870, %v1571, %v1573
        %v1582 = vsel %vm870, %v1575, %v1577
        %v1583 = vsel %vm870, %v1577, %v1579
        %1588 = vst [vmem:[#allocation5 + $0xe0] sm:$0xff] %v1580
        %1589 = vst [vmem:[#allocation5 + $0xe8] sm:$0xff] %v1581
        %1590 = vst [vmem:[#allocation5 + $0xf0] sm:$0xff] %v1582
        %1591 = vst [vmem:[#allocation5 + $0xf8] sm:$0xff] %v1583
        %v1592 = vld [vmem:[#allocation3 + $0x8] sm:$0xff]
        %v1593 = vld [vmem:[#allocation3 + $0x10] sm:$0xff]
        %v1594 = vld [vmem:[#allocation3 + $0x18] sm:$0xff]
        %v1595 = vld [vmem:[#allocation3 + $0x28] sm:$0xff]
        %v1596 = vld [vmem:[#allocation3 + $0x30] sm:$0xff]
        %v1597 = vld [vmem:[#allocation3 + $0x38] sm:$0xff]
        %v1598 = vld [vmem:[%s2] sm:$0xa]
        %v1601 = vunpack.c.l.s4 1983009808
        %v1602 = vunpack.c.0.s8 %v1601
        %v1603 = vlaneseq
        %v1604 = vshrl.u32 %v1603, 7
        %v1605 = vsub.s32 %v1602, %v1604
        %v1606 = vrot.slane %v1598, %v1605
        %v1607 = vcombine.high %v1606, %v1606
        %v1609 = vpack.i.b16 %v1606, %v1606
        %v1611 = vlaneseq
        %v1612 = vshrl.u32 %v1611, 7
        %v1613 = vsub.s32 1, %v1612
        %v1614 = vrot.slane %v1609, %v1613
        %v1616 = vpack.i.b16 %v1607, %v1607
        %v1618 = vlaneseq
        %v1619 = vshrl.u32 %v1618, 7
        %v1620 = vsub.s32 1, %v1619
        %v1621 = vrot.slane %v1616, %v1620
        %1624 = vrot.lane.b32.xlu0 %v1614, 17
        %v1625 = vpop.permute.xlu0 %1624
        %1626 = vrot.lane.b32.xlu0 %v1621, 17
        %v1627 = vpop.permute.xlu0 %1626
        %v1628 = vsel %vm531, %v1625, %v1627
        %v1632 = vmul.bf16 %v1592, %v1625
        %v1633 = vmul.bf16 %v1593, %v1628
        %v1634 = vmul.bf16 %v1594, %v1627
        %v1635 = vmul.bf16 %v1595, %v1625
        %v1636 = vmul.bf16 %v1596, %v1628
        %v1637 = vmul.bf16 %v1597, %v1627
        %1644 = vrot.lane.b32.xlu0 %v1632, 111
        %v1645 = vpop.permute.xlu0 %1644
        %1646 = vrot.lane.b32.xlu0 %v1633, 111
        %v1647 = vpop.permute.xlu0 %1646
        %1648 = vrot.lane.b32.xlu0 %v1634, 111
        %v1649 = vpop.permute.xlu0 %1648
        %1650 = vrot.lane.b32.xlu0 %v1635, 111
        %v1651 = vpop.permute.xlu0 %1650
        %1652 = vrot.lane.b32.xlu0 %v1636, 111
        %v1653 = vpop.permute.xlu0 %1652
        %1654 = vrot.lane.b32.xlu0 %v1637, 111
        %v1655 = vpop.permute.xlu0 %1654
        %v1656 = vsel %vm503, %v1645, %v1647
        %v1657 = vsel %vm503, %v1647, %v1649
        %v1658 = vsel %vm503, %v1651, %v1653
        %v1659 = vsel %vm503, %v1653, %v1655
        %1664 = vst [vmem:[#allocation5 + $0x100] sm:$0xff] %v1656
        %1665 = vst [vmem:[#allocation5 + $0x108] sm:$0xff] %v1657
        %1666 = vst [vmem:[#allocation5 + $0x110] sm:$0xff] %v1658
        %1667 = vst [vmem:[#allocation5 + $0x118] sm:$0xff] %v1659
        %v1668 = vld [vmem:[%s6] sm:$0xff]
        %v1669 = vld [vmem:[%s6 + $0x8] sm:$0xf]
        %v1670 = vld [vmem:[%s6 + $0xc] sm:$0xff]
        %v1671 = vld [vmem:[%s6 + $0x14] sm:$0xf]
        %v1672 = vld [vmem:[%s6 + $0x18] sm:$0xff]
        %v1673 = vld [vmem:[%s6 + $0x20] sm:$0xf]
        %v1674 = vld [vmem:[%s6 + $0x24] sm:$0xff]
        %v1675 = vld [vmem:[%s6 + $0x2c] sm:$0xf]
        %v1676 = vld [vmem:[#allocation5] sm:$0xff]
        %v1677 = vld [vmem:[#allocation5 + $0x8] sm:$0xff]
        %v1678 = vld [vmem:[#allocation5 + $0x10] sm:$0xff]
        %v1679 = vld [vmem:[#allocation5 + $0x18] sm:$0xff]
        %v1680 = vld [vmem:[#allocation5 + $0x20] sm:$0xff]
        %v1681 = vld [vmem:[#allocation5 + $0x28] sm:$0xff]
        %v1682 = vld [vmem:[#allocation5 + $0x30] sm:$0xff]
        %v1683 = vld [vmem:[#allocation5 + $0x38] sm:$0xff]
        %v1684 = vld [vmem:[#allocation5 + $0x40] sm:$0xff]
        %v1685 = vld [vmem:[#allocation5 + $0x48] sm:$0xff]
        %v1686 = vld [vmem:[#allocation5 + $0x50] sm:$0xff]
        %v1687 = vld [vmem:[#allocation5 + $0x58] sm:$0xff]
        %v1688 = vld [vmem:[#allocation5 + $0x60] sm:$0xff]
        %v1689 = vld [vmem:[#allocation5 + $0x68] sm:$0xff]
        %v1690 = vld [vmem:[#allocation5 + $0x70] sm:$0xff]
        %v1691 = vld [vmem:[#allocation5 + $0x78] sm:$0xff]
        %v1692 = vld [vmem:[#allocation5 + $0x80] sm:$0xff]
        %v1693 = vld [vmem:[#allocation5 + $0x88] sm:$0xff]
        %v1694 = vld [vmem:[#allocation5 + $0x90] sm:$0xff]
        %v1695 = vld [vmem:[#allocation5 + $0x98] sm:$0xff]
        %v1696 = vld [vmem:[#allocation5 + $0xa0] sm:$0xff]
        %v1697 = vld [vmem:[#allocation5 + $0xa8] sm:$0xff]
        %v1698 = vld [vmem:[#allocation5 + $0xb0] sm:$0xff]
        %v1699 = vld [vmem:[#allocation5 + $0xb8] sm:$0xff]
        %v1700 = vld [vmem:[#allocation5 + $0xc0] sm:$0xff]
        %v1701 = vld [vmem:[#allocation5 + $0xc8] sm:$0xff]
        %v1702 = vld [vmem:[#allocation5 + $0xd0] sm:$0xff]
        %v1703 = vld [vmem:[#allocation5 + $0xd8] sm:$0xff]
        %v1704 = vld [vmem:[#allocation5 + $0xe0] sm:$0xff]
        %v1705 = vld [vmem:[#allocation5 + $0xe8] sm:$0xff]
        %v1706 = vld [vmem:[#allocation5 + $0xf0] sm:$0xff]
        %v1707 = vld [vmem:[#allocation5 + $0xf8] sm:$0xff]
        %v1708 = vld [vmem:[#allocation5 + $0x100] sm:$0xff]
        %v1709 = vld [vmem:[#allocation5 + $0x108] sm:$0xff]
        %v1710 = vld [vmem:[#allocation5 + $0x110] sm:$0xff]
        %v1711 = vld [vmem:[#allocation5 + $0x118] sm:$0xff]
        %v1712 = vld [vmem:[%s7] sm:$0xff]
        %v1713 = vld [vmem:[%s7 + $0x8] sm:$0xff]
        %v1714 = vld [vmem:[%s7 + $0x10] sm:$0xff]
        %v1715 = vld [vmem:[%s7 + $0x18] sm:$0xff]
        %1717 = vset.pattern.permute.xlu0 0
        %1718 = vperm.xlu0 %1717, %v1712
        %v1719 = vpop.permute.xlu0 %1718
        %1722 = vset.pattern.permute.xlu0 0
        %1723 = vperm.xlu0 %1722, %v1713
        %v1724 = vpop.permute.xlu0 %1723
        %1727 = vset.pattern.permute.xlu0 0
        %1728 = vperm.xlu0 %1727, %v1714
        %v1729 = vpop.permute.xlu0 %1728
        %1732 = vset.pattern.permute.xlu0 0
        %1733 = vperm.xlu0 %1732, %v1715
        %v1734 = vpop.permute.xlu0 %1733
        %v1744 = vunpack.c.l.b16 %v1668
        %v1745 = vunpack.c.h.b16 %v1668
        %v1746 = vunpack.c.l.b16 %v1669
        %v1747 = vunpack.c.l.b16 %v1670
        %v1748 = vunpack.c.h.b16 %v1670
        %v1749 = vunpack.c.l.b16 %v1671
        %v1750 = vunpack.c.l.b16 %v1672
        %v1751 = vunpack.c.h.b16 %v1672
        %v1752 = vunpack.c.l.b16 %v1673
        %v1753 = vunpack.c.l.b16 %v1674
        %v1754 = vunpack.c.h.b16 %v1674
        %v1755 = vunpack.c.l.b16 %v1675
        %v1756 = vpack.c.b16 %v1747, %v1744
        %v1757 = vpack.c.b16 %v1748, %v1745
        %v1758 = vpack.c.b16 %v1749, %v1746
        %v1759 = vpack.c.b16 %v1753, %v1750
        %v1760 = vpack.c.b16 %v1754, %v1751
        %v1761 = vpack.c.b16 %v1755, %v1752
        %vm1766 = vcmask 261120
        %v1768 = vsel %vm1766, %v1758, 0
        %v1771 = vsel %vm1766, %v1761, 0
        %1773 = vmatprep.subr.bf16.mxu0 %v1677
        %1774 = vmatpush1.bf16.msra.mxu0 %v1676
        %1775 = vmatprep.subr.bf16.mxu0 %v1679
        %1776 = vmatpush1.bf16.msra.mxu0 %v1678
        %1777 = vmatprep.subr.bf16.mxu0 %v1681
        %1778 = vmatpush1.bf16.msra.mxu0 %v1680
        %1779 = vmatprep.subr.bf16.mxu0 %v1683
        %1780 = vmatpush1.bf16.msra.mxu0 %v1682
        %1781 = vmatprep.subr.bf16.mxu0 %v1685
        %1782 = vmatpush1.bf16.msra.mxu0 %v1684
        %1783 = vmatprep.subr.bf16.mxu0 %v1687
        %1784 = vmatpush1.bf16.msra.mxu0 %v1686
        %1785 = vmatprep.subr.bf16.mxu0 %v1689
        %1786 = vmatpush1.bf16.msra.mxu0 %v1688
        %1787 = vmatprep.subr.bf16.mxu0 %v1691
        %1788 = vmatpush1.bf16.msra.mxu0 %v1690
        %1789 = vmatprep.subr.bf16.mxu0 %v1693
        %1790 = vmatpush1.bf16.msra.mxu0 %v1692
        %1791 = vmatprep.subr.bf16.mxu0 %v1695
        %1792 = vmatpush1.bf16.msra.mxu0 %v1694
        %1793 = vmatprep.subr.bf16.mxu0 %v1697
        %1794 = vmatpush1.bf16.msra.mxu0 %v1696
        %1795 = vmatprep.subr.bf16.mxu0 %v1699
        %1796 = vmatpush1.bf16.msra.mxu0 %v1698
        %1797 = vmatprep.subr.bf16.mxu0 %v1701
        %1798 = vmatpush1.bf16.msra.mxu0 %v1700
        %1799 = vmatprep.subr.bf16.mxu0 %v1703
        %1800 = vmatpush1.bf16.msra.mxu0 %v1702
        %1801 = vmatprep.subr.bf16.mxu0 %v1705
        %1802 = vmatpush1.bf16.msra.mxu0 %v1704
        %1803 = vmatprep.subr.bf16.mxu0 %v1707
        %1804 = vmatpush1.bf16.msra.mxu0 %v1706
        %1805 = vmatprep.mubr.bf16.mxu0 %v1757
        %1806 = vmatmul.mubr.bf16.gmra.mrb[0].mxu0 %v1756
        %v1807 = vpop.f32.mrb[0].mxu0
        %v1808 = vadd.f32 %v1719, %v1807
        %v1809 = vpop.f32.mrb[0].mxu0
        %v1810 = vadd.f32 %v1719, %v1809
        %v1811 = vpop.f32.mrb[0].mxu0
        %v1812 = vadd.f32 %v1724, %v1811
        %v1813 = vpop.f32.mrb[0].mxu0
        %v1814 = vadd.f32 %v1724, %v1813
        %1815 = vmatprep.mubr.bf16.mxu0 %v1760
        %1816 = vmatmul.mubr.bf16.gmra.mrb[0].mxu0 %v1759
        %v1817 = vpop.f32.mrb[0].mxu0
        %v1818 = vadd.f32 %v1729, %v1817
        %v1819 = vpop.f32.mrb[0].mxu0
        %v1820 = vadd.f32 %v1729, %v1819
        %v1821 = vpop.f32.mrb[0].mxu0
        %v1822 = vadd.f32 %v1734, %v1821
        %v1823 = vpop.f32.mrb[0].mxu0
        %v1824 = vadd.f32 %v1734, %v1823
        %1825 = vdwg.mxu0
        %1826 = vmatprep.subr.bf16.mxu0 %v1709
        %1827 = vmatpush1.bf16.msra.mxu0 %v1708
        %1828 = vmatprep.subr.bf16.mxu0 %v1711
        %1829 = vmatpush1.bf16.msra.mxu0 %v1710
        %1830 = vmatprep.subr.bf16.mxu0 0
        %1831 = vmatpush1.bf16.msra.mxu0 0
        %1832 = vmatprep.subr.bf16.mxu0 0
        %1833 = vmatpush1.bf16.msra.mxu0 0
        %1834 = vmatprep.subr.bf16.mxu0 0
        %1835 = vmatpush1.bf16.msra.mxu0 0
        %1836 = vmatprep.subr.bf16.mxu0 0
        %1837 = vmatpush1.bf16.msra.mxu0 0
        %1838 = vmatprep.subr.bf16.mxu0 0
        %1839 = vmatpush1.bf16.msra.mxu0 0
        %1840 = vmatprep.subr.bf16.mxu0 0
        %1841 = vmatpush1.bf16.msra.mxu0 0
        %1842 = vmatprep.subr.bf16.mxu0 0
        %1843 = vmatpush1.bf16.msra.mxu0 0
        %1844 = vmatprep.subr.bf16.mxu0 0
        %1845 = vmatpush1.bf16.msra.mxu0 0
        %1846 = vmatprep.subr.bf16.mxu0 0
        %1847 = vmatpush1.bf16.msra.mxu0 0
        %1848 = vmatprep.subr.bf16.mxu0 0
        %1849 = vmatpush1.bf16.msra.mxu0 0
        %1850 = vmatprep.subr.bf16.mxu0 0
        %1851 = vmatpush1.bf16.msra.mxu0 0
        %1852 = vmatprep.subr.bf16.mxu0 0
        %1853 = vmatpush1.bf16.msra.mxu0 0
        %1854 = vmatprep.subr.bf16.mxu0 0
        %1855 = vmatpush1.bf16.msra.mxu0 0
        %1856 = vmatprep.subr.bf16.mxu0 0
        %1857 = vmatpush1.bf16.msra.mxu0 0
        %1858 = vmatprep.mubr.bf16.mxu0 0
        %1859 = vmatmul.mubr.bf16.gmra.mrb[0].mxu0 %v1768
        %v1860 = vpop.f32.mrb[0].mxu0
        %v1861 = vadd.f32 %v1808, %v1860
        %v1862 = vpop.f32.mrb[0].mxu0
        %v1863 = vadd.f32 %v1810, %v1862
        %v1864 = vpop.f32.mrb[0].mxu0
        %v1865 = vadd.f32 %v1812, %v1864
        %v1866 = vpop.f32.mrb[0].mxu0
        %v1867 = vadd.f32 %v1814, %v1866
        %1868 = vmatprep.mubr.bf16.mxu0 0
        %1869 = vmatmul.mubr.bf16.gmra.mrb[0].mxu0 %v1771
        %v1870 = vpop.f32.mrb[0].mxu0
        %v1871 = vadd.f32 %v1818, %v1870
        %v1872 = vpop.f32.mrb[0].mxu0
        %v1873 = vadd.f32 %v1820, %v1872
        %v1874 = vpop.f32.mrb[0].mxu0
        %v1875 = vadd.f32 %v1822, %v1874
        %v1876 = vpop.f32.mrb[0].mxu0
        %v1877 = vadd.f32 %v1824, %v1876
        %1878 = vdwg.mxu0
        %vm1879 = vcmp.ge.f32.partialorder %v1861, 0.0
        %vm1880 = vcmp.ge.f32.partialorder %v1863, 0.0
        %vm1881 = vcmp.ge.f32.partialorder %v1865, 0.0
        %vm1882 = vcmp.ge.f32.partialorder %v1867, 0.0
        %vm1883 = vcmp.ge.f32.partialorder %v1871, 0.0
        %vm1884 = vcmp.ge.f32.partialorder %v1873, 0.0
        %vm1885 = vcmp.ge.f32.partialorder %v1875, 0.0
        %vm1886 = vcmp.ge.f32.partialorder %v1877, 0.0
        %v1887 = vld [vmem:[%s8] sm:$0xff]
        %v1888 = vld [vmem:[%s8 + $0x8] sm:$0xff]
        %v1889 = vld [vmem:[%s8 + $0x10] sm:$0xff]
        %v1890 = vld [vmem:[%s8 + $0x18] sm:$0xff]
        %1892 = vset.pattern.permute.xlu0 0
        %1893 = vperm.xlu0 %1892, %v1887
        %v1894 = vpop.permute.xlu0 %1893
        %1897 = vset.pattern.permute.xlu0 0
        %1898 = vperm.xlu0 %1897, %v1888
        %v1899 = vpop.permute.xlu0 %1898
        %1902 = vset.pattern.permute.xlu0 0
        %1903 = vperm.xlu0 %1902, %v1889
        %v1904 = vpop.permute.xlu0 %1903
        %1907 = vset.pattern.permute.xlu0 0
        %1908 = vperm.xlu0 %1907, %v1890
        %v1909 = vpop.permute.xlu0 %1908
        %v1911 = vmul.f32 %v1894, %v1861
        %v1912 = vmul.f32 %v1894, %v1863
        %v1913 = vmul.f32 %v1899, %v1865
        %v1914 = vmul.f32 %v1899, %v1867
        %v1915 = vmul.f32 %v1904, %v1871
        %v1916 = vmul.f32 %v1904, %v1873
        %v1917 = vmul.f32 %v1909, %v1875
        %v1918 = vmul.f32 %v1909, %v1877
        %v1919 = vsel %vm1879, %v1861, %v1911
        %v1920 = vsel %vm1880, %v1863, %v1912
        %v1921 = vsel %vm1881, %v1865, %v1913
        %v1922 = vsel %vm1882, %v1867, %v1914
        %v1923 = vsel %vm1883, %v1871, %v1915
        %v1924 = vsel %vm1884, %v1873, %v1916
        %v1925 = vsel %vm1885, %v1875, %v1917
        %v1926 = vsel %vm1886, %v1877, %v1918
        %v1927 = vpack.c.bf16 %v1921, %v1919
        %v1928 = vpack.c.bf16 %v1922, %v1920
        %v1929 = vpack.c.bf16 %v1925, %v1923
        %v1930 = vpack.c.bf16 %v1926, %v1924
        %1931 = vst [vmem:[#allocation3 + $0x8] sm:$0xff] %v1927
        %1932 = vst [vmem:[#allocation3 + $0x10] sm:$0xff] %v1928
        %1933 = vst [vmem:[#allocation3 + $0x28] sm:$0xff] %v1929
        %1934 = vst [vmem:[#allocation3 + $0x30] sm:$0xff] %v1930
        %v1935 = vld [vmem:[#allocation3] sm:$0xff]
        %v1936 = vld [vmem:[#allocation3 + $0x8] sm:$0xff]
        %v1937 = vld [vmem:[#allocation3 + $0x10] sm:$0xff]
        %v1938 = vld [vmem:[#allocation3 + $0x20] sm:$0xff]
        %v1939 = vld [vmem:[#allocation3 + $0x28] sm:$0xff]
        %v1940 = vld [vmem:[#allocation3 + $0x30] sm:$0xff]
        %v1941 = vld [vmem:[%s2] sm:$0x5]
        %v1944 = vunpack.c.l.s4 1983009808
        %v1945 = vunpack.c.0.s8 %v1944
        %v1946 = vlaneseq
        %v1947 = vshrl.u32 %v1946, 7
        %v1948 = vsub.s32 %v1945, %v1947
        %v1949 = vrot.slane %v1941, %v1948
        %v1950 = vcombine.high %v1949, %v1949
        %v1952 = vpack.i.b16 %v1949, %v1949
        %v1954 = vlaneseq
        %v1955 = vshrl.u32 %v1954, 7
        %v1956 = vsub.s32 0, %v1955
        %v1957 = vrot.slane %v1952, %v1956
        %v1959 = vpack.i.b16 %v1950, %v1950
        %v1961 = vlaneseq
        %v1962 = vshrl.u32 %v1961, 7
        %v1963 = vsub.s32 0, %v1962
        %v1964 = vrot.slane %v1959, %v1963
        %1967 = vrot.lane.b32.xlu0 %v1957, 111
        %v1968 = vpop.permute.xlu0 %1967
        %1969 = vrot.lane.b32.xlu0 %v1964, 111
        %v1970 = vpop.permute.xlu0 %1969
        %v1971 = vsel %vm503, %v1968, %v1970
        %v1975 = vmul.bf16 %v1935, %v1968
        %v1976 = vmul.bf16 %v1936, %v1971
        %v1977 = vmul.bf16 %v1937, %v1970
        %v1978 = vmul.bf16 %v1938, %v1968
        %v1979 = vmul.bf16 %v1939, %v1971
        %v1980 = vmul.bf16 %v1940, %v1970
        %1987 = vrot.lane.b32.xlu0 %v1975, 17
        %v1988 = vpop.permute.xlu0 %1987
        %1989 = vrot.lane.b32.xlu0 %v1976, 17
        %v1990 = vpop.permute.xlu0 %1989
        %1991 = vrot.lane.b32.xlu0 %v1977, 17
        %v1992 = vpop.permute.xlu0 %1991
        %1993 = vrot.lane.b32.xlu0 %v1978, 17
        %v1994 = vpop.permute.xlu0 %1993
        %1995 = vrot.lane.b32.xlu0 %v1979, 17
        %v1996 = vpop.permute.xlu0 %1995
        %1997 = vrot.lane.b32.xlu0 %v1980, 17
        %v1998 = vpop.permute.xlu0 %1997
        %v1999 = vsel %vm531, %v1988, %v1990
        %v2000 = vsel %vm531, %v1990, %v1992
        %v2001 = vsel %vm531, %v1994, %v1996
        %v2002 = vsel %vm531, %v1996, %v1998
        %2007 = vst [vmem:[#allocation5] sm:$0xff] %v1999
        %2008 = vst [vmem:[#allocation5 + $0x8] sm:$0xff] %v2000
        %2009 = vst [vmem:[#allocation5 + $0x10] sm:$0xff] %v2001
        %2010 = vst [vmem:[#allocation5 + $0x18] sm:$0xff] %v2002
        %v2011 = vld [vmem:[#allocation3] sm:$0xff]
        %v2012 = vld [vmem:[#allocation3 + $0x8] sm:$0xff]
        %v2013 = vld [vmem:[#allocation3 + $0x10] sm:$0xff]
        %v2014 = vld [vmem:[#allocation3 + $0x20] sm:$0xff]
        %v2015 = vld [vmem:[#allocation3 + $0x28] sm:$0xff]
        %v2016 = vld [vmem:[#allocation3 + $0x30] sm:$0xff]
        %2023 = vrot.lane.b32.xlu0 %v2011, 16
        %v2024 = vpop.permute.xlu0 %2023
        %2025 = vrot.lane.b32.xlu0 %v2012, 16
        %v2026 = vpop.permute.xlu0 %2025
        %2027 = vrot.lane.b32.xlu0 %v2013, 16
        %v2028 = vpop.permute.xlu0 %2027
        %2029 = vrot.lane.b32.xlu0 %v2014, 16
        %v2030 = vpop.permute.xlu0 %2029
        %2031 = vrot.lane.b32.xlu0 %v2015, 16
        %v2032 = vpop.permute.xlu0 %2031
        %2033 = vrot.lane.b32.xlu0 %v2016, 16
        %v2034 = vpop.permute.xlu0 %2033
        %v2035 = vsel %vm559, %v2024, %v2026
        %v2036 = vsel %vm559, %v2026, %v2028
        %v2037 = vsel %vm559, %v2030, %v2032
        %v2038 = vsel %vm559, %v2032, %v2034
        %2043 = vst [vmem:[#allocation5 + $0x20] sm:$0xff] %v2035
        %2044 = vst [vmem:[#allocation5 + $0x28] sm:$0xff] %v2036
        %2045 = vst [vmem:[#allocation5 + $0x30] sm:$0xff] %v2037
        %2046 = vst [vmem:[#allocation5 + $0x38] sm:$0xff] %v2038
        %v2047 = vld [vmem:[#allocation3] sm:$0xff]
        %v2048 = vld [vmem:[#allocation3 + $0x8] sm:$0xff]
        %v2049 = vld [vmem:[#allocation3 + $0x10] sm:$0xff]
        %v2050 = vld [vmem:[#allocation3 + $0x20] sm:$0xff]
        %v2051 = vld [vmem:[#allocation3 + $0x28] sm:$0xff]
        %v2052 = vld [vmem:[#allocation3 + $0x30] sm:$0xff]
        %v2053 = vld [vmem:[%s2] sm:$0xa]
        %v2056 = vunpack.c.l.s4 1983009808
        %v2057 = vunpack.c.0.s8 %v2056
        %v2058 = vlaneseq
        %v2059 = vshrl.u32 %v2058, 7
        %v2060 = vsub.s32 %v2057, %v2059
        %v2061 = vrot.slane %v2053, %v2060
        %v2062 = vcombine.high %v2061, %v2061
        %v2064 = vpack.i.b16 %v2061, %v2061
        %v2066 = vlaneseq
        %v2067 = vshrl.u32 %v2066, 7
        %v2068 = vsub.s32 1, %v2067
        %v2069 = vrot.slane %v2064, %v2068
        %v2071 = vpack.i.b16 %v2062, %v2062
        %v2073 = vlaneseq
        %v2074 = vshrl.u32 %v2073, 7
        %v2075 = vsub.s32 1, %v2074
        %v2076 = vrot.slane %v2071, %v2075
        %2079 = vrot.lane.b32.xlu0 %v2069, 113
        %v2080 = vpop.permute.xlu0 %2079
        %2081 = vrot.lane.b32.xlu0 %v2076, 113
        %v2082 = vpop.permute.xlu0 %2081
        %v2083 = vsel %vm601, %v2080, %v2082
        %v2087 = vmul.bf16 %v2047, %v2080
        %v2088 = vmul.bf16 %v2048, %v2083
        %v2089 = vmul.bf16 %v2049, %v2082
        %v2090 = vmul.bf16 %v2050, %v2080
        %v2091 = vmul.bf16 %v2051, %v2083
        %v2092 = vmul.bf16 %v2052, %v2082
        %2099 = vrot.lane.b32.xlu0 %v2087, 15
        %v2100 = vpop.permute.xlu0 %2099
        %2101 = vrot.lane.b32.xlu0 %v2088, 15
        %v2102 = vpop.permute.xlu0 %2101
        %2103 = vrot.lane.b32.xlu0 %v2089, 15
        %v2104 = vpop.permute.xlu0 %2103
        %2105 = vrot.lane.b32.xlu0 %v2090, 15
        %v2106 = vpop.permute.xlu0 %2105
        %2107 = vrot.lane.b32.xlu0 %v2091, 15
        %v2108 = vpop.permute.xlu0 %2107
        %2109 = vrot.lane.b32.xlu0 %v2092, 15
        %v2110 = vpop.permute.xlu0 %2109
        %v2111 = vsel %vm628, %v2100, %v2102
        %v2112 = vsel %vm628, %v2102, %v2104
        %v2113 = vsel %vm628, %v2106, %v2108
        %v2114 = vsel %vm628, %v2108, %v2110
        %2119 = vst [vmem:[#allocation5 + $0x40] sm:$0xff] %v2111
        %2120 = vst [vmem:[#allocation5 + $0x48] sm:$0xff] %v2112
        %2121 = vst [vmem:[#allocation5 + $0x50] sm:$0xff] %v2113
        %2122 = vst [vmem:[#allocation5 + $0x58] sm:$0xff] %v2114
        %v2123 = vld [vmem:[#allocation3] sm:$0xff]
        %v2124 = vld [vmem:[#allocation3 + $0x8] sm:$0xff]
        %v2125 = vld [vmem:[#allocation3 + $0x10] sm:$0xff]
        %v2126 = vld [vmem:[#allocation3 + $0x20] sm:$0xff]
        %v2127 = vld [vmem:[#allocation3 + $0x28] sm:$0xff]
        %v2128 = vld [vmem:[#allocation3 + $0x30] sm:$0xff]
        %v2129 = vld [vmem:[%s2] sm:$0x5]
        %v2132 = vunpack.c.l.s4 1983009808
        %v2133 = vunpack.c.0.s8 %v2132
        %v2134 = vlaneseq
        %v2135 = vshrl.u32 %v2134, 7
        %v2136 = vsub.s32 %v2133, %v2135
        %v2137 = vrot.slane %v2129, %v2136
        %v2138 = vcombine.high %v2137, %v2137
        %v2140 = vpack.i.b16 %v2137, %v2137
        %v2142 = vlaneseq
        %v2143 = vshrl.u32 %v2142, 7
        %v2144 = vsub.s32 0, %v2143
        %v2145 = vrot.slane %v2140, %v2144
        %v2147 = vpack.i.b16 %v2138, %v2138
        %v2149 = vlaneseq
        %v2150 = vshrl.u32 %v2149, 7
        %v2151 = vsub.s32 0, %v2150
        %v2152 = vrot.slane %v2147, %v2151
        %2155 = vrot.lane.b32.xlu0 %v2145, 127
        %v2156 = vpop.permute.xlu0 %2155
        %2157 = vrot.lane.b32.xlu0 %v2152, 127
        %v2158 = vpop.permute.xlu0 %2157
        %v2159 = vsel %vm670, %v2156, %v2158
        %v2163 = vmul.bf16 %v2123, %v2156
        %v2164 = vmul.bf16 %v2124, %v2159
        %v2165 = vmul.bf16 %v2125, %v2158
        %v2166 = vmul.bf16 %v2126, %v2156
        %v2167 = vmul.bf16 %v2127, %v2159
        %v2168 = vmul.bf16 %v2128, %v2158
        %2175 = vrot.lane.b32.xlu0 %v2163, 1
        %v2176 = vpop.permute.xlu0 %2175
        %2177 = vrot.lane.b32.xlu0 %v2164, 1
        %v2178 = vpop.permute.xlu0 %2177
        %2179 = vrot.lane.b32.xlu0 %v2165, 1
        %v2180 = vpop.permute.xlu0 %2179
        %2181 = vrot.lane.b32.xlu0 %v2166, 1
        %v2182 = vpop.permute.xlu0 %2181
        %2183 = vrot.lane.b32.xlu0 %v2167, 1
        %v2184 = vpop.permute.xlu0 %2183
        %2185 = vrot.lane.b32.xlu0 %v2168, 1
        %v2186 = vpop.permute.xlu0 %2185
        %v2187 = vsel %vm697, %v2176, %v2178
        %v2188 = vsel %vm697, %v2178, %v2180
        %v2189 = vsel %vm697, %v2182, %v2184
        %v2190 = vsel %vm697, %v2184, %v2186
        %2195 = vst [vmem:[#allocation5 + $0x60] sm:$0xff] %v2187
        %2196 = vst [vmem:[#allocation5 + $0x68] sm:$0xff] %v2188
        %2197 = vst [vmem:[#allocation5 + $0x70] sm:$0xff] %v2189
        %2198 = vst [vmem:[#allocation5 + $0x78] sm:$0xff] %v2190
        %v2199 = vld [vmem:[#allocation3 + $0x8] sm:$0xff]
        %v2200 = vld [vmem:[#allocation3 + $0x10] sm:$0xff]
        %v2201 = vld [vmem:[#allocation3 + $0x28] sm:$0xff]
        %v2202 = vld [vmem:[#allocation3 + $0x30] sm:$0xff]
        %2203 = vst [vmem:[#allocation5 + $0x80] sm:$0xff] %v2199
        %2204 = vst [vmem:[#allocation5 + $0x88] sm:$0xff] %v2200
        %2205 = vst [vmem:[#allocation5 + $0x90] sm:$0xff] %v2201
        %2206 = vst [vmem:[#allocation5 + $0x98] sm:$0xff] %v2202
        %v2207 = vld [vmem:[#allocation3 + $0x8] sm:$0xff]
        %v2208 = vld [vmem:[#allocation3 + $0x10] sm:$0xff]
        %v2209 = vld [vmem:[#allocation3 + $0x18] sm:$0xff]
        %v2210 = vld [vmem:[#allocation3 + $0x28] sm:$0xff]
        %v2211 = vld [vmem:[#allocation3 + $0x30] sm:$0xff]
        %v2212 = vld [vmem:[#allocation3 + $0x38] sm:$0xff]
        %v2213 = vld [vmem:[%s2] sm:$0xa]
        %v2216 = vunpack.c.l.s4 1983009808
        %v2217 = vunpack.c.0.s8 %v2216
        %v2218 = vlaneseq
        %v2219 = vshrl.u32 %v2218, 7
        %v2220 = vsub.s32 %v2217, %v2219
        %v2221 = vrot.slane %v2213, %v2220
        %v2222 = vcombine.high %v2221, %v2221
        %v2224 = vpack.i.b16 %v2221, %v2221
        %v2226 = vlaneseq
        %v2227 = vshrl.u32 %v2226, 7
        %v2228 = vsub.s32 1, %v2227
        %v2229 = vrot.slane %v2224, %v2228
        %v2231 = vpack.i.b16 %v2222, %v2222
        %v2233 = vlaneseq
        %v2234 = vshrl.u32 %v2233, 7
        %v2235 = vsub.s32 1, %v2234
        %v2236 = vrot.slane %v2231, %v2235
        %2239 = vrot.lane.b32.xlu0 %v2229, 1
        %v2240 = vpop.permute.xlu0 %2239
        %2241 = vrot.lane.b32.xlu0 %v2236, 1
        %v2242 = vpop.permute.xlu0 %2241
        %v2243 = vsel %vm697, %v2240, %v2242
        %v2247 = vmul.bf16 %v2207, %v2240
        %v2248 = vmul.bf16 %v2208, %v2243
        %v2249 = vmul.bf16 %v2209, %v2242
        %v2250 = vmul.bf16 %v2210, %v2240
        %v2251 = vmul.bf16 %v2211, %v2243
        %v2252 = vmul.bf16 %v2212, %v2242
        %2259 = vrot.lane.b32.xlu0 %v2247, 127
        %v2260 = vpop.permute.xlu0 %2259
        %2261 = vrot.lane.b32.xlu0 %v2248, 127
        %v2262 = vpop.permute.xlu0 %2261
        %2263 = vrot.lane.b32.xlu0 %v2249, 127
        %v2264 = vpop.permute.xlu0 %2263
        %2265 = vrot.lane.b32.xlu0 %v2250, 127
        %v2266 = vpop.permute.xlu0 %2265
        %2267 = vrot.lane.b32.xlu0 %v2251, 127
        %v2268 = vpop.permute.xlu0 %2267
        %2269 = vrot.lane.b32.xlu0 %v2252, 127
        %v2270 = vpop.permute.xlu0 %2269
        %v2271 = vsel %vm670, %v2260, %v2262
        %v2272 = vsel %vm670, %v2262, %v2264
        %v2273 = vsel %vm670, %v2266, %v2268
        %v2274 = vsel %vm670, %v2268, %v2270
        %2279 = vst [vmem:[#allocation5 + $0xa0] sm:$0xff] %v2271
        %2280 = vst [vmem:[#allocation5 + $0xa8] sm:$0xff] %v2272
        %2281 = vst [vmem:[#allocation5 + $0xb0] sm:$0xff] %v2273
        %2282 = vst [vmem:[#allocation5 + $0xb8] sm:$0xff] %v2274
        %v2283 = vld [vmem:[#allocation3 + $0x8] sm:$0xff]
        %v2284 = vld [vmem:[#allocation3 + $0x10] sm:$0xff]
        %v2285 = vld [vmem:[#allocation3 + $0x18] sm:$0xff]
        %v2286 = vld [vmem:[#allocation3 + $0x28] sm:$0xff]
        %v2287 = vld [vmem:[#allocation3 + $0x30] sm:$0xff]
        %v2288 = vld [vmem:[#allocation3 + $0x38] sm:$0xff]
        %v2289 = vld [vmem:[%s2] sm:$0x5]
        %v2292 = vunpack.c.l.s4 1983009808
        %v2293 = vunpack.c.0.s8 %v2292
        %v2294 = vlaneseq
        %v2295 = vshrl.u32 %v2294, 7
        %v2296 = vsub.s32 %v2293, %v2295
        %v2297 = vrot.slane %v2289, %v2296
        %v2298 = vcombine.high %v2297, %v2297
        %v2300 = vpack.i.b16 %v2297, %v2297
        %v2302 = vlaneseq
        %v2303 = vshrl.u32 %v2302, 7
        %v2304 = vsub.s32 0, %v2303
        %v2305 = vrot.slane %v2300, %v2304
        %v2307 = vpack.i.b16 %v2298, %v2298
        %v2309 = vlaneseq
        %v2310 = vshrl.u32 %v2309, 7
        %v2311 = vsub.s32 0, %v2310
        %v2312 = vrot.slane %v2307, %v2311
        %2315 = vrot.lane.b32.xlu0 %v2305, 15
        %v2316 = vpop.permute.xlu0 %2315
        %2317 = vrot.lane.b32.xlu0 %v2312, 15
        %v2318 = vpop.permute.xlu0 %2317
        %v2319 = vsel %vm628, %v2316, %v2318
        %v2323 = vmul.bf16 %v2283, %v2316
        %v2324 = vmul.bf16 %v2284, %v2319
        %v2325 = vmul.bf16 %v2285, %v2318
        %v2326 = vmul.bf16 %v2286, %v2316
        %v2327 = vmul.bf16 %v2287, %v2319
        %v2328 = vmul.bf16 %v2288, %v2318
        %2335 = vrot.lane.b32.xlu0 %v2323, 113
        %v2336 = vpop.permute.xlu0 %2335
        %2337 = vrot.lane.b32.xlu0 %v2324, 113
        %v2338 = vpop.permute.xlu0 %2337
        %2339 = vrot.lane.b32.xlu0 %v2325, 113
        %v2340 = vpop.permute.xlu0 %2339
        %2341 = vrot.lane.b32.xlu0 %v2326, 113
        %v2342 = vpop.permute.xlu0 %2341
        %2343 = vrot.lane.b32.xlu0 %v2327, 113
        %v2344 = vpop.permute.xlu0 %2343
        %2345 = vrot.lane.b32.xlu0 %v2328, 113
        %v2346 = vpop.permute.xlu0 %2345
        %v2347 = vsel %vm601, %v2336, %v2338
        %v2348 = vsel %vm601, %v2338, %v2340
        %v2349 = vsel %vm601, %v2342, %v2344
        %v2350 = vsel %vm601, %v2344, %v2346
        %2355 = vst [vmem:[#allocation5 + $0xc0] sm:$0xff] %v2347
        %2356 = vst [vmem:[#allocation5 + $0xc8] sm:$0xff] %v2348
        %2357 = vst [vmem:[#allocation5 + $0xd0] sm:$0xff] %v2349
        %2358 = vst [vmem:[#allocation5 + $0xd8] sm:$0xff] %v2350
        %v2359 = vld [vmem:[#allocation3 + $0x8] sm:$0xff]
        %v2360 = vld [vmem:[#allocation3 + $0x10] sm:$0xff]
        %v2361 = vld [vmem:[#allocation3 + $0x18] sm:$0xff]
        %v2362 = vld [vmem:[#allocation3 + $0x28] sm:$0xff]
        %v2363 = vld [vmem:[#allocation3 + $0x30] sm:$0xff]
        %v2364 = vld [vmem:[#allocation3 + $0x38] sm:$0xff]
        %2371 = vrot.lane.b32.xlu0 %v2359, 112
        %v2372 = vpop.permute.xlu0 %2371
        %2373 = vrot.lane.b32.xlu0 %v2360, 112
        %v2374 = vpop.permute.xlu0 %2373
        %2375 = vrot.lane.b32.xlu0 %v2361, 112
        %v2376 = vpop.permute.xlu0 %2375
        %2377 = vrot.lane.b32.xlu0 %v2362, 112
        %v2378 = vpop.permute.xlu0 %2377
        %2379 = vrot.lane.b32.xlu0 %v2363, 112
        %v2380 = vpop.permute.xlu0 %2379
        %2381 = vrot.lane.b32.xlu0 %v2364, 112
        %v2382 = vpop.permute.xlu0 %2381
        %v2383 = vsel %vm870, %v2372, %v2374
        %v2384 = vsel %vm870, %v2374, %v2376
        %v2385 = vsel %vm870, %v2378, %v2380
        %v2386 = vsel %vm870, %v2380, %v2382
        %2391 = vst [vmem:[#allocation5 + $0xe0] sm:$0xff] %v2383
        %2392 = vst [vmem:[#allocation5 + $0xe8] sm:$0xff] %v2384
        %2393 = vst [vmem:[#allocation5 + $0xf0] sm:$0xff] %v2385
        %2394 = vst [vmem:[#allocation5 + $0xf8] sm:$0xff] %v2386
        %v2395 = vld [vmem:[#allocation3 + $0x8] sm:$0xff]
        %v2396 = vld [vmem:[#allocation3 + $0x10] sm:$0xff]
        %v2397 = vld [vmem:[#allocation3 + $0x18] sm:$0xff]
        %v2398 = vld [vmem:[#allocation3 + $0x28] sm:$0xff]
        %v2399 = vld [vmem:[#allocation3 + $0x30] sm:$0xff]
        %v2400 = vld [vmem:[#allocation3 + $0x38] sm:$0xff]
        %v2401 = vld [vmem:[%s2] sm:$0xa]
        %v2404 = vunpack.c.l.s4 1983009808
        %v2405 = vunpack.c.0.s8 %v2404
        %v2406 = vlaneseq
        %v2407 = vshrl.u32 %v2406, 7
        %v2408 = vsub.s32 %v2405, %v2407
        %v2409 = vrot.slane %v2401, %v2408
        %v2410 = vcombine.high %v2409, %v2409
        %v2412 = vpack.i.b16 %v2409, %v2409
        %v2414 = vlaneseq
        %v2415 = vshrl.u32 %v2414, 7
        %v2416 = vsub.s32 1, %v2415
        %v2417 = vrot.slane %v2412, %v2416
        %v2419 = vpack.i.b16 %v2410, %v2410
        %v2421 = vlaneseq
        %v2422 = vshrl.u32 %v2421, 7
        %v2423 = vsub.s32 1, %v2422
        %v2424 = vrot.slane %v2419, %v2423
        %2427 = vrot.lane.b32.xlu0 %v2417, 17
        %v2428 = vpop.permute.xlu0 %2427
        %2429 = vrot.lane.b32.xlu0 %v2424, 17
        %v2430 = vpop.permute.xlu0 %2429
        %v2431 = vsel %vm531, %v2428, %v2430
        %v2435 = vmul.bf16 %v2395, %v2428
        %v2436 = vmul.bf16 %v2396, %v2431
        %v2437 = vmul.bf16 %v2397, %v2430
        %v2438 = vmul.bf16 %v2398, %v2428
        %v2439 = vmul.bf16 %v2399, %v2431
        %v2440 = vmul.bf16 %v2400, %v2430
        %2447 = vrot.lane.b32.xlu0 %v2435, 111
        %v2448 = vpop.permute.xlu0 %2447
        %2449 = vrot.lane.b32.xlu0 %v2436, 111
        %v2450 = vpop.permute.xlu0 %2449
        %2451 = vrot.lane.b32.xlu0 %v2437, 111
        %v2452 = vpop.permute.xlu0 %2451
        %2453 = vrot.lane.b32.xlu0 %v2438, 111
        %v2454 = vpop.permute.xlu0 %2453
        %2455 = vrot.lane.b32.xlu0 %v2439, 111
        %v2456 = vpop.permute.xlu0 %2455
        %2457 = vrot.lane.b32.xlu0 %v2440, 111
        %v2458 = vpop.permute.xlu0 %2457
        %v2459 = vsel %vm503, %v2448, %v2450
        %v2460 = vsel %vm503, %v2450, %v2452
        %v2461 = vsel %vm503, %v2454, %v2456
        %v2462 = vsel %vm503, %v2456, %v2458
        %2467 = vst [vmem:[#allocation5 + $0x100] sm:$0xff] %v2459
        %2468 = vst [vmem:[#allocation5 + $0x108] sm:$0xff] %v2460
        %2469 = vst [vmem:[#allocation5 + $0x110] sm:$0xff] %v2461
        %2470 = vst [vmem:[#allocation5 + $0x118] sm:$0xff] %v2462
        %v2471 = vld [vmem:[%s9] sm:$0x7]
        %v2472 = vld [vmem:[#allocation5] sm:$0xff]
        %v2473 = vld [vmem:[#allocation5 + $0x8] sm:$0xff]
        %v2474 = vld [vmem:[#allocation5 + $0x10] sm:$0xff]
        %v2475 = vld [vmem:[#allocation5 + $0x18] sm:$0xff]
        %v2476 = vld [vmem:[#allocation5 + $0x20] sm:$0xff]
        %v2477 = vld [vmem:[#allocation5 + $0x28] sm:$0xff]
        %v2478 = vld [vmem:[#allocation5 + $0x30] sm:$0xff]
        %v2479 = vld [vmem:[#allocation5 + $0x38] sm:$0xff]
        %v2480 = vld [vmem:[#allocation5 + $0x40] sm:$0xff]
        %v2481 = vld [vmem:[#allocation5 + $0x48] sm:$0xff]
        %v2482 = vld [vmem:[#allocation5 + $0x50] sm:$0xff]
        %v2483 = vld [vmem:[#allocation5 + $0x58] sm:$0xff]
        %v2484 = vld [vmem:[#allocation5 + $0x60] sm:$0xff]
        %v2485 = vld [vmem:[#allocation5 + $0x68] sm:$0xff]
        %v2486 = vld [vmem:[#allocation5 + $0x70] sm:$0xff]
        %v2487 = vld [vmem:[#allocation5 + $0x78] sm:$0xff]
        %v2488 = vld [vmem:[#allocation5 + $0x80] sm:$0xff]
        %v2489 = vld [vmem:[#allocation5 + $0x88] sm:$0xff]
        %v2490 = vld [vmem:[#allocation5 + $0x90] sm:$0xff]
        %v2491 = vld [vmem:[#allocation5 + $0x98] sm:$0xff]
        %v2492 = vld [vmem:[#allocation5 + $0xa0] sm:$0xff]
        %v2493 = vld [vmem:[#allocation5 + $0xa8] sm:$0xff]
        %v2494 = vld [vmem:[#allocation5 + $0xb0] sm:$0xff]
        %v2495 = vld [vmem:[#allocation5 + $0xb8] sm:$0xff]
        %v2496 = vld [vmem:[#allocation5 + $0xc0] sm:$0xff]
        %v2497 = vld [vmem:[#allocation5 + $0xc8] sm:$0xff]
        %v2498 = vld [vmem:[#allocation5 + $0xd0] sm:$0xff]
        %v2499 = vld [vmem:[#allocation5 + $0xd8] sm:$0xff]
        %v2500 = vld [vmem:[#allocation5 + $0xe0] sm:$0xff]
        %v2501 = vld [vmem:[#allocation5 + $0xe8] sm:$0xff]
        %v2502 = vld [vmem:[#allocation5 + $0xf0] sm:$0xff]
        %v2503 = vld [vmem:[#allocation5 + $0xf8] sm:$0xff]
        %v2504 = vld [vmem:[#allocation5 + $0x100] sm:$0xff]
        %v2505 = vld [vmem:[#allocation5 + $0x108] sm:$0xff]
        %v2506 = vld [vmem:[#allocation5 + $0x110] sm:$0xff]
        %v2507 = vld [vmem:[#allocation5 + $0x118] sm:$0xff]
        %v2508 = vld [vmem:[%s10] sm:$0x3]
        %2510 = vset.pattern.permute.xlu0 0
        %2511 = vperm.xlu0 %2510, %v2508
        %v2512 = vpop.permute.xlu0 %2511
        %v2516 = vunpack.c.l.s4 1966171168
        %v2517 = vunpack.c.0.s8 %v2516
        %v2518 = vlaneseq
        %v2519 = vshrl.u32 %v2518, 7
        %v2520 = vsub.s32 %v2517, %v2519
        %v2521 = vrot.slane %v2471, %v2520
        %v2522 = vcombine.high %v2521, %v2521
        %v2524 = vunpack.c.l.s4 1966171168
        %v2525 = vunpack.c.0.s8 %v2524
        %v2526 = vlaneseq
        %v2527 = vshrl.u32 %v2526, 7
        %v2528 = vsub.s32 %v2525, %v2527
        %v2529 = vrot.slane %v2521, %v2528
        %v2531 = vunpack.c.l.s4 1966171168
        %v2532 = vunpack.c.0.s8 %v2531
        %v2533 = vlaneseq
        %v2534 = vshrl.u32 %v2533, 7
        %v2535 = vsub.s32 %v2532, %v2534
        %v2536 = vrot.slane %v2522, %v2535
        %v2537 = vcombine.high %v2529, %v2529
        %v2541 = vsel %vm1766, %v2537, 0
        %2543 = vmatprep.subr.bf16.mxu0 %v2473
        %2544 = vmatpush1.bf16.msra.mxu0 %v2472
        %2545 = vmatprep.subr.bf16.mxu0 %v2475
        %2546 = vmatpush1.bf16.msra.mxu0 %v2474
        %2547 = vmatprep.subr.bf16.mxu0 %v2477
        %2548 = vmatpush1.bf16.msra.mxu0 %v2476
        %2549 = vmatprep.subr.bf16.mxu0 %v2479
        %2550 = vmatpush1.bf16.msra.mxu0 %v2478
        %2551 = vmatprep.subr.bf16.mxu0 %v2481
        %2552 = vmatpush1.bf16.msra.mxu0 %v2480
        %2553 = vmatprep.subr.bf16.mxu0 %v2483
        %2554 = vmatpush1.bf16.msra.mxu0 %v2482
        %2555 = vmatprep.subr.bf16.mxu0 %v2485
        %2556 = vmatpush1.bf16.msra.mxu0 %v2484
        %2557 = vmatprep.subr.bf16.mxu0 %v2487
        %2558 = vmatpush1.bf16.msra.mxu0 %v2486
        %2559 = vmatprep.subr.bf16.mxu0 %v2489
        %2560 = vmatpush1.bf16.msra.mxu0 %v2488
        %2561 = vmatprep.subr.bf16.mxu0 %v2491
        %2562 = vmatpush1.bf16.msra.mxu0 %v2490
        %2563 = vmatprep.subr.bf16.mxu0 %v2493
        %2564 = vmatpush1.bf16.msra.mxu0 %v2492
        %2565 = vmatprep.subr.bf16.mxu0 %v2495
        %2566 = vmatpush1.bf16.msra.mxu0 %v2494
        %2567 = vmatprep.subr.bf16.mxu0 %v2497
        %2568 = vmatpush1.bf16.msra.mxu0 %v2496
        %2569 = vmatprep.subr.bf16.mxu0 %v2499
        %2570 = vmatpush1.bf16.msra.mxu0 %v2498
        %2571 = vmatprep.subr.bf16.mxu0 %v2501
        %2572 = vmatpush1.bf16.msra.mxu0 %v2500
        %2573 = vmatprep.subr.bf16.mxu0 %v2503
        %2574 = vmatpush1.bf16.msra.mxu0 %v2502
        %2575 = vmatprep.mubr.bf16.mxu0 %v2536
        %2576 = vmatmul.mubr.bf16.gmra.mrb[0].mxu0 %v2529
        %v2577 = vpop.f32.mrb[0].mxu0
        %v2578 = vadd.f32 %v2512, %v2577
        %v2579 = vpop.f32.mrb[0].mxu0
        %v2580 = vadd.f32 %v2512, %v2579
        %v2581 = vpop.f32.mrb[0].mxu0
        %v2582 = vpop.f32.mrb[0].mxu0
        %2583 = vdwg.mxu0
        %2584 = vmatprep.subr.bf16.mxu0 %v2505
        %2585 = vmatpush1.bf16.msra.mxu0 %v2504
        %2586 = vmatprep.subr.bf16.mxu0 %v2507
        %2587 = vmatpush1.bf16.msra.mxu0 %v2506
        %2588 = vmatprep.subr.bf16.mxu0 0
        %2589 = vmatpush1.bf16.msra.mxu0 0
        %2590 = vmatprep.subr.bf16.mxu0 0
        %2591 = vmatpush1.bf16.msra.mxu0 0
        %2592 = vmatprep.subr.bf16.mxu0 0
        %2593 = vmatpush1.bf16.msra.mxu0 0
        %2594 = vmatprep.subr.bf16.mxu0 0
        %2595 = vmatpush1.bf16.msra.mxu0 0
        %2596 = vmatprep.subr.bf16.mxu0 0
        %2597 = vmatpush1.bf16.msra.mxu0 0
        %2598 = vmatprep.subr.bf16.mxu0 0
        %2599 = vmatpush1.bf16.msra.mxu0 0
        %2600 = vmatprep.subr.bf16.mxu0 0
        %2601 = vmatpush1.bf16.msra.mxu0 0
        %2602 = vmatprep.subr.bf16.mxu0 0
        %2603 = vmatpush1.bf16.msra.mxu0 0
        %2604 = vmatprep.subr.bf16.mxu0 0
        %2605 = vmatpush1.bf16.msra.mxu0 0
        %2606 = vmatprep.subr.bf16.mxu0 0
        %2607 = vmatpush1.bf16.msra.mxu0 0
        %2608 = vmatprep.subr.bf16.mxu0 0
        %2609 = vmatpush1.bf16.msra.mxu0 0
        %2610 = vmatprep.subr.bf16.mxu0 0
        %2611 = vmatpush1.bf16.msra.mxu0 0
        %2612 = vmatprep.subr.bf16.mxu0 0
        %2613 = vmatpush1.bf16.msra.mxu0 0
        %2614 = vmatprep.subr.bf16.mxu0 0
        %2615 = vmatpush1.bf16.msra.mxu0 0
        %2616 = vmatprep.mubr.bf16.mxu0 0
        %2617 = vmatmul.mubr.bf16.gmra.mrb[0].mxu0 %v2541
        %v2618 = vpop.f32.mrb[0].mxu0
        %v2619 = vadd.f32 %v2578, %v2618
        %v2620 = vpop.f32.mrb[0].mxu0
        %v2621 = vadd.f32 %v2580, %v2620
        %v2622 = vpop.f32.mrb[0].mxu0
        %v2623 = vpop.f32.mrb[0].mxu0
        %2624 = vdwg.mxu0
        %v2627 = vcombine.low %v2619, %v2621
        %v2629 = vunpack.c.l.s4 1983009808
        %v2630 = vunpack.c.0.s8 %v2629
        %v2631 = vlaneseq
        %v2632 = vshrl.u32 %v2631, 7
        %v2633 = vsub.s32 %v2630, %v2632
        %v2634 = vrot.slane %v2627, %v2633
        %v2636 = vadd.f32 %v412, %v2634
        %2637 = vst [vmem:[%s394] sm:$0xf] %v2636
        %s2638 = sand.u32 %s274, 1
        %s2639 = scalar_lea.sflag [#allocation7], %s2638
        %s2640 = sand.u32 %s274, 1
        %s2641 = smul.addr %s2640, 4
        %s2642 = scalar_lea.vmem [#allocation6], %s2641
        // Predicated region
        $region65: #{tpu_custom_call.1} parent=63 // pred_check
          %p2643 = pneg %p284
        $region66: #{tpu_custom_call.1} parent=63 // pred_check_branch
          %2645 = sbr.rel (%p2643) target = $region68
        $region67: #{tpu_custom_call.1} parent=63 // pred_region
          %s2647 = ssub.s32 64, 64
          %2648 = vsyncadd %s2639, %s2647
          %s2649 = smul.addr %s25, 2
          %s2650 = smul.addr %s2649, 32
          %s2651 = scalar_lea.hbm %s11, %s2650
          %s2653 = sshll.u32 %s2642, 4
          %s2654 = int_to_ptr.vmem [resolvable:$true] %s2653
          %2656 = dma.vmem_to_hbm [thread:$0]  %s2654, 64, %s2651, %s2639
        $region68: #{tpu_custom_call.1} parent=63 // pred_fallthru
          _
      $region64: #{tpu_custom_call.1} parent=5 // pred_fallthru
        _
      %p2657 = scmp.le.s32.totalorder 2, %s20
      // Predicated region
      $region69: #{tpu_custom_call.1} parent=5 // pred_check
        %p2658 = pneg %p2657
      $region70: #{tpu_custom_call.1} parent=5 // pred_check_branch
        %2660 = sbr.rel (%p2658) target = $region72
      $region71: #{tpu_custom_call.1} parent=5 // pred_region
        %s2661 = ssub.s32 %s20, 2
        // Predicated region
        $region73: #{tpu_custom_call.1} parent=71 // pred_check
          %p2662 = pneg %p290
        $region74: #{tpu_custom_call.1} parent=71 // pred_check_branch
          %2664 = sbr.rel (%p2662) target = $region76
        $region75: #{tpu_custom_call.1} parent=71 // pred_region
          %s2665 = sand.u32 %s275, 1
          %s2666 = scalar_lea.sflag [#allocation7], %s2665
          %s2667 = sand.u32 %s275, 1
          %s2668 = smul.addr %s2667, 4
          %s2669 = scalar_lea.vmem [#allocation6], %s2668
          %2670 = dma.done %s2666, 64
        $region76: #{tpu_custom_call.1} parent=71 // pred_fallthru
          _
      $region72: #{tpu_custom_call.1} parent=5 // pred_fallthru
        _
    $region6: #{tpu_custom_call.1} parent=1 // loop_footer
      %s24 = sadd.s32 1, %s20
    $region7: #{tpu_custom_call.1} parent=1 // loop_footer_branch
      %19 = sbr.rel target = $region3
    $region8: #{tpu_custom_call.1} parent=1 // loop_exit
      _
    %2671 = vsyncpa [#allocation7], 1
    %s2672 = scalar_lea.sflag [#allocation7], 1
    %2673 = vsyncpa %s2672, 1

</llo_original>
